<compile_context>
chip_gen: v6e
topology: v6e:2x2x1
jax: 0.10.0
libtpu: 0.0.40
codegen_flags: <defaults>
</compile_context>

<pallas_src>
import functools

import jax
import jax.numpy as jnp
from jax.experimental import pallas as pl
from jax.experimental.pallas import tpu as pltpu

K = 5          # Conv1d kernel_size used in TemporalBlock
N_SPLIT = 2    # fc1 reduction split (one slot per v7x TensorCore)
_FC1_TILES = (8192, 4096, 2048, 1024, 512, 256, 128)


# -----------------------------------------------------------------------------
# Fused 4-layer conv stack: (Conv1d + bias + ReLU + MaxPool1d(3,1)) x 4
# -----------------------------------------------------------------------------
def _layer_out_len(l, dilation):
    return (l - dilation * (K - 1)) - 2      # valid conv then MaxPool1d(3, stride=1)


def _win(a, l_per, off, size, nb):
    """Per-sample lane windows of a lane-packed (C, nb*l_per) array -> (C, nb*size)."""
    if nb == 1:
        return a[:, off:off + size]
    return jnp.concatenate(
        [a[:, b * l_per + off: b * l_per + off + size] for b in range(nb)], axis=1)


def _conv_layer(h, l_per, w_ref, b_ref, dilation, nb):
    # h: (C_in, nb*l_per) f32 (lane-packed per sample).
    l_conv = l_per - dilation * (K - 1)
    l_out = l_conv - 2
    hb = h.astype(jnp.bfloat16)                        # cast once BEFORE im2col (vreg pressure)
    cols = jnp.concatenate(
        [_win(hb, l_per, k * dilation, l_conv, nb) for k in range(K)], axis=0)
    acc = jnp.dot(w_ref[...], cols, preferred_element_type=jnp.float32)
    acc = jnp.maximum(acc + b_ref[...], 0.0)           # bias + ReLU (f32)
    out = jnp.maximum(jnp.maximum(_win(acc, l_conv, 0, l_out, nb),
                                  _win(acc, l_conv, 1, l_out, nb)),
                      _win(acc, l_conv, 2, l_out, nb))  # MaxPool1d(3, 1)
    return out, l_out


def _conv_stack_kernel(x_ref, w1_ref, b1_ref, w2_ref, b2_ref, w3_ref, b3_ref,
                       w4_ref, b4_ref, o_ref, *, dilations):
    nb, _, l_in = x_ref.shape                          # c_in == 1 for this module
    if nb == 1:
        h = x_ref[0].astype(jnp.float32)               # (1, l_in)
    else:                                              # lane-pack samples: (1, nb*l_in)
        h = jnp.concatenate([x_ref[b] for b in range(nb)], axis=1).astype(jnp.float32)

    l = l_in
    layer_refs = ((w1_ref, b1_ref), (w2_ref, b2_ref), (w3_ref, b3_ref), (w4_ref, b4_ref))
    for (w_ref, b_ref), d in zip(layer_refs, dilations):
        h, l = _conv_layer(h, l, w_ref, b_ref, d, nb)

    # Natural lane-dense store: (c_out, nb*l_out), sample-major along lanes.
    o_ref[...] = h.astype(o_ref.dtype)


def _pick_batch_block(n, l_out):
    # Largest batch block that keeps output lane blocks 128-aligned (or covers N).
    for nb in (8, 4, 2, 1):
        if n % nb == 0 and (nb == n or (nb * l_out) % 128 == 0):
            return nb
    return n


def conv_stack(x, conv_params, dilations):
    # x: (N, 1, L_in) f32
    # conv_params: [(w2col bf16 (C_out, K*C_in), bias f32 (C_out, 1)), ...] x 4
    n, c_in, l_in = x.shape
    assert c_in == 1, "TemporalConvNet's first conv has a single input channel"
    l_out = l_in
    for d in dilations:
        l_out = _layer_out_len(l_out, d)
    (w1, b1), (w2, b2), (w3, b3), (w4, b4) = conv_params
    c_out = w4.shape[0]
    nb = _pick_batch_block(n, l_out)

    def wfull(a):
        return pl.BlockSpec(a.shape, lambda i: (0, 0))

    kernel = functools.partial(_conv_stack_kernel, dilations=tuple(dilations))
    return pl.pallas_call(
        kernel,
        out_shape=jax.ShapeDtypeStruct((c_out, n * l_out), jnp.bfloat16),
        grid=(n // nb,),
        in_specs=[
            pl.BlockSpec((nb, c_in, l_in), lambda i: (i, 0, 0)),
            wfull(w1), wfull(b1), wfull(w2), wfull(b2),
            wfull(w3), wfull(b3), wfull(w4), wfull(b4),
        ],
        out_specs=pl.BlockSpec((c_out, nb * l_out), lambda i: (0, i)),
        compiler_params=pltpu.CompilerParams(dimension_semantics=("parallel",)),
    )(x, w1, b1, w2, b2, w3, b3, w4, b4)


# -----------------------------------------------------------------------------
# Head: fc1 (split + streamed reduction) -> fc2 -> fc3 -> softmax(dim=1)
# -----------------------------------------------------------------------------
def fc1_padded_features(f, n_split=N_SPLIT):
    """Row count for the prepacked fc1 weight: F rounded up so the split
    reduction tiles evenly.  Zero-padded activation rows contribute nothing."""
    for tf in _FC1_TILES:
        if f % (n_split * tf) == 0:
            return f
        if f >= 4 * n_split * tf:                      # pad overhead <= ~12.5%
            return int(pl.cdiv(f, n_split * tf)) * (n_split * tf)
    return int(pl.cdiv(f, n_split * 128)) * (n_split * 128)


def _fc1_tile(f_pad, n_split=N_SPLIT):
    for tf in _FC1_TILES:
        if f_pad % (n_split * tf) == 0:
            return tf
    raise ValueError(f"fc1 rows {f_pad} not a multiple of {n_split * 128}")


def _fc1_weight_spec(tf, h1, index_map):
    """fc1 weight stream BlockSpec; triple-buffered where the API supports it."""
    if hasattr(pl, "Buffered"):
        try:
            return pl.BlockSpec((tf, h1), index_map, pipeline_mode=pl.Buffered(3))
        except TypeError:
            pass
    return pl.BlockSpec((tf, h1), index_map)


def _fc1_partial_kernel(x_ref, w1_ref, part_ref):
    c = pl.program_id(0)                               # reduction split (v7x: per-TC)
    t = pl.program_id(1)                               # reduction step within split
    steps = pl.num_programs(1)
    tf = w1_ref.shape[0]

    @pl.when(t == 0)
    def _():
        part_ref[...] = jnp.zeros_like(part_ref)

    start = pl.multiple_of((c * steps + t) * tf, tf)   # slice the resident activation
    part_ref[...] += jnp.dot(x_ref[:, pl.ds(start, tf)], w1_ref[...],
                             preferred_element_type=jnp.float32)


def _head_tail_kernel(part_ref, b1_ref, w2_ref, b2_ref, w3_ref, b3_ref, o_ref):
    h1 = b1_ref.shape[1]
    n_split = part_ref.shape[1] // h1
    p = part_ref[...]
    h = b1_ref[...]
    for c in range(n_split):                           # combine per-core fc1 partials
        h = h + p[:, c * h1:(c + 1) * h1]
    # TODO(synk): nn.Dropout(p=0.2) after fc1/fc2 is stochastic; identity here (eval semantics).
    h = jnp.dot(h.astype(jnp.bfloat16), w2_ref[...],
                preferred_element_type=jnp.float32) + b2_ref[...]
    logits = jnp.dot(h.astype(jnp.bfloat16), w3_ref[...],
                     preferred_element_type=jnp.float32) + b3_ref[...]
    z = logits - jnp.max(logits, axis=1, keepdims=True)
    e = jnp.exp(z)
    o_ref[...] = (e / jnp.sum(e, axis=1, keepdims=True)).astype(o_ref.dtype)


def fc_head(flat, w1, b1, w2, b2, w3, b3, *, n_split=N_SPLIT):
    # flat: (1, F) bf16 (conv-kernel flatten order); w1: (F_pad, 128) bf16 prepacked.
    f = flat.shape[1]
    f_pad, h1 = w1.shape
    assert f_pad >= f and f_pad % (n_split * 128) == 0
    if f_pad != f:
        flat = jnp.pad(flat, ((0, 0), (0, f_pad - f)))  # zero rows -> zero fc1 contribution
    tf = _fc1_tile(f_pad, n_split)
    steps = f_pad // (n_split * tf)

    partials = pl.pallas_call(
        _fc1_partial_kernel,
        out_shape=jax.ShapeDtypeStruct((1, n_split * h1), jnp.float32),
        grid=(n_split, steps),
        in_specs=[
            pl.BlockSpec((1, f_pad), lambda c, t: (0, 0)),           # resident activation
            _fc1_weight_spec(tf, h1, lambda c, t: (c * steps + t, 0)),  # weight stream
        ],
        out_specs=pl.BlockSpec((1, h1), lambda c, t: (0, c)),
        compiler_params=pltpu.CompilerParams(
            dimension_semantics=("parallel", "arbitrary"),
            vmem_limit_bytes=32 * 1024 * 1024),
    )(flat, w1)

    h2, h3 = w2.shape[1], w3.shape[1]
    return pl.pallas_call(
        _head_tail_kernel,
        out_shape=jax.ShapeDtypeStruct((1, h3), jnp.float32),
        grid=(1,),
        in_specs=[pl.BlockSpec((1, n_split * h1), lambda i: (0, 0)),
                  pl.BlockSpec((1, h1), lambda i: (0, 0)),
                  pl.BlockSpec((h1, h2), lambda i: (0, 0)),
                  pl.BlockSpec((1, h2), lambda i: (0, 0)),
                  pl.BlockSpec((h2, h3), lambda i: (0, 0)),
                  pl.BlockSpec((1, h3), lambda i: (0, 0))],
        out_specs=pl.BlockSpec((1, h3), lambda i: (0, 0)),
    )(partials, b1, w2, b2, w3, b3)


# -----------------------------------------------------------------------------
# Full forward: 2 TemporalBlocks (conv->relu->pool twice each) + MLP head
# -----------------------------------------------------------------------------
def temporal_conv_net(x, params):
    dilations = (1, 1, 2, 2)                   # block i uses dilation 2**i, two convs each
    h = conv_stack(x, params["convs"], dilations)     # (64, N*l_out) bf16, lane dense
    flat = h.reshape(1, -1)                    # channel-major flatten; fc1 rows pre-permuted
    w1, b1 = params["fc1"]
    w2, b2 = params["fc2"]
    w3, b3 = params["fc3"]
    return fc_head(flat, w1, b1, w2, b2, w3, b3)


# -----------------------------------------------------------------------------
# Parameter init (deterministic, in-script) + one-time prepacking
# -----------------------------------------------------------------------------
def init_conv(key, c_in, c_out=64):
    kv, kb = jax.random.split(key)
    v = 0.01 * jax.random.normal(kv, (c_out, c_in, K), jnp.float32)  # weight_v ~ N(0, 0.01)
    w = v                                                            # weight_norm: g=||v|| -> w=v
    bound = 1.0 / jnp.sqrt(float(c_in * K))
    b = jax.random.uniform(kb, (c_out,), jnp.float32, -bound, bound)
    return w, b


def prepack_conv(w, b):
    c_out, c_in, _ = w.shape
    w2col = jnp.transpose(w, (0, 2, 1)).reshape(c_out, K * c_in).astype(jnp.bfloat16)
    return w2col, b.reshape(c_out, 1).astype(jnp.float32)


def init_linear(key, fan_in, fan_out):
    kw, kb = jax.random.split(key)
    bound = 1.0 / jnp.sqrt(float(fan_in))
    w = jax.random.uniform(kw, (fan_in, fan_out), jnp.float32, -bound, bound)
    b = jax.random.uniform(kb, (fan_out,), jnp.float32, -bound, bound)
    return w, b


def prepack_linear(w, b):
    return w.astype(jnp.bfloat16), b.reshape(1, -1).astype(jnp.float32)


def prepack_fc1(w, b, n, c_out, l_out):
    # Permute canonical PyTorch flatten order (n, c, l) -> kernel order (c, n, l),
    # then zero-pad rows to the split-reduction tile multiple, cast bf16.
    f, h1 = w.shape
    assert f == n * c_out * l_out
    w = w.reshape(n, c_out, l_out, h1).transpose(1, 0, 2, 3).reshape(f, h1)
    f_pad = fc1_padded_features(f)
    if f_pad > f:
        w = jnp.pad(w, ((0, f_pad - f), (0, 0)))
    return w.astype(jnp.bfloat16), b.reshape(1, -1).astype(jnp.float32)


# -----------------------------------------------------------------------------
# Pure-JAX f32 reference (canonical layouts) for validation
# -----------------------------------------------------------------------------
def ref_forward(x, conv_params, fc_params, dilations):
    h = x.astype(jnp.float32)
    for (w, b), d in zip(conv_params, dilations):
        l_conv = h.shape[2] - d * (K - 1)
        out = b[None, :, None] + sum(
            jnp.einsum('oc,ncl->nol', w[:, :, k], h[:, :, k * d:k * d + l_conv])
            for k in range(K))
        out = jnp.maximum(out, 0.0)
        l_out = l_conv - 2
        out = jnp.maximum(jnp.maximum(out[..., 0:l_out], out[..., 1:1 + l_out]),
                          out[..., 2:2 + l_out])
        h = out
    flat = h.reshape(1, -1)
    (w1, b1), (w2, b2), (w3, b3) = fc_params
    a = flat @ w1 + b1
    a = a @ w2 + b2
    logits = a @ w3 + b3
    return jax.nn.softmax(logits, axis=1)


if __name__ == "__main__":
    key = jax.random.PRNGKey(0)
    keys = jax.random.split(key, 8)

    # Small input consistent with the module (NCL layout, single input channel).
    N, C_IN, L_IN = 2, 1, 80
    x = jax.random.normal(keys[0], (N, C_IN, L_IN), jnp.float32)

    dilations = (1, 1, 2, 2)
    conv_raw = [
        init_conv(keys[1], 1),    # block0.conv1: Conv1d(1, 64, 5, dil=1)
        init_conv(keys[2], 64),   # block0.conv2: Conv1d(64, 64, 5, dil=1)
        init_conv(keys[3], 64),   # block1.conv1: Conv1d(64, 64, 5, dil=2)
        init_conv(keys[4], 64),   # block1.conv2: Conv1d(64, 64, 5, dil=2)
    ]

    l = L_IN
    for d in dilations:
        l = _layer_out_len(l, d)
    flat_features = N * 64 * l    # small-shape analogue of the nominal 64*168*30

    fc1_raw = init_linear(keys[5], flat_features, 128)
    fc2_raw = init_linear(keys[6], 128, 128)
    fc3_raw = init_linear(keys[7], 128, 8)

    params = {
        "convs": [prepack_conv(w, b) for (w, b) in conv_raw],
        "fc1": prepack_fc1(*fc1_raw, n=N, c_out=64, l_out=l),
        "fc2": prepack_linear(*fc2_raw),
        "fc3": prepack_linear(*fc3_raw),
    }

    out = temporal_conv_net(x, params)
    jax.block_until_ready(out)

    ref = ref_forward(x, conv_raw, (fc1_raw, fc2_raw, fc3_raw), dilations)
    assert out.shape == (1, 8)
    assert bool(jnp.allclose(jnp.sum(out), 1.0, atol=1e-5))          # softmax sums to 1
    assert bool(jnp.allclose(out, ref, atol=1e-2))                   # bf16 kernel vs f32 ref
    print("KERNEL_OK")
</pallas_src>

<mosaic_0001>
module attributes {stable_mosaic.version = 11 : i64} {
  func.func @_conv_stack_kernel(%arg0: i32, %arg1: memref<2x1x80xf32, #tpu.memory_space<vmem>>, %arg2: memref<64x5xbf16, #tpu.memory_space<vmem>>, %arg3: memref<64x1xf32, #tpu.memory_space<vmem>>, %arg4: memref<64x320xbf16, #tpu.memory_space<vmem>>, %arg5: memref<64x1xf32, #tpu.memory_space<vmem>>, %arg6: memref<64x320xbf16, #tpu.memory_space<vmem>>, %arg7: memref<64x1xf32, #tpu.memory_space<vmem>>, %arg8: memref<64x320xbf16, #tpu.memory_space<vmem>>, %arg9: memref<64x1xf32, #tpu.memory_space<vmem>>, %arg10: memref<64x96xbf16, #tpu.memory_space<vmem>>) attributes {dimension_semantics = [#tpu.dimension_semantics<parallel>], iteration_bounds = array<i64: 1>, scalar_prefetch = 0 : i64, scratch_operands = 0 : i64, tpu.core_type = #tpu.core_type<tc>, window_params = [{transform_indices = @transform_0, window_bounds = array<i64: 2, 1, 80>}, {pipeline_mode = #tpu.pipeline_mode<synchronous>, transform_indices = @transform_1, window_bounds = array<i64: 64, 5>}, {pipeline_mode = #tpu.pipeline_mode<synchronous>, transform_indices = @transform_2, window_bounds = array<i64: 64, 1>}, {pipeline_mode = #tpu.pipeline_mode<synchronous>, transform_indices = @transform_3, window_bounds = array<i64: 64, 320>}, {pipeline_mode = #tpu.pipeline_mode<synchronous>, transform_indices = @transform_4, window_bounds = array<i64: 64, 1>}, {pipeline_mode = #tpu.pipeline_mode<synchronous>, transform_indices = @transform_5, window_bounds = array<i64: 64, 320>}, {pipeline_mode = #tpu.pipeline_mode<synchronous>, transform_indices = @transform_6, window_bounds = array<i64: 64, 1>}, {pipeline_mode = #tpu.pipeline_mode<synchronous>, transform_indices = @transform_7, window_bounds = array<i64: 64, 320>}, {pipeline_mode = #tpu.pipeline_mode<synchronous>, transform_indices = @transform_8, window_bounds = array<i64: 64, 1>}, {transform_indices = @transform_9, window_bounds = array<i64: 64, 96>}]} {
    %c0 = arith.constant 0 : index
    %c0_0 = arith.constant 0 : index
    %c0_1 = arith.constant 0 : index
    %0 = vector.load %arg1[%c0, %c0_0, %c0_1] : memref<2x1x80xf32, #tpu.memory_space<vmem>>, vector<1x1x80xf32>
    %1 = vector.shape_cast %0 : vector<1x1x80xf32> to vector<1x80xf32>
    %c1 = arith.constant 1 : index
    %c0_2 = arith.constant 0 : index
    %c0_3 = arith.constant 0 : index
    %2 = vector.load %arg1[%c1, %c0_2, %c0_3] : memref<2x1x80xf32, #tpu.memory_space<vmem>>, vector<1x1x80xf32>
    %3 = vector.shape_cast %2 : vector<1x1x80xf32> to vector<1x80xf32>
    %4 = tpu.concatenate %1, %3 in 1 : vector<1x80xf32>, vector<1x80xf32> -> vector<1x160xf32>
    %5 = arith.truncf %4 : vector<1x160xf32> to vector<1x160xbf16>
    %6 = vector.extract_strided_slice %5 {offsets = [0, 0], sizes = [1, 76], strides = [1, 1]} : vector<1x160xbf16> to vector<1x76xbf16>
    %7 = vector.extract_strided_slice %5 {offsets = [0, 80], sizes = [1, 76], strides = [1, 1]} : vector<1x160xbf16> to vector<1x76xbf16>
    %8 = tpu.concatenate %6, %7 in 1 : vector<1x76xbf16>, vector<1x76xbf16> -> vector<1x152xbf16>
    %9 = vector.extract_strided_slice %5 {offsets = [0, 1], sizes = [1, 76], strides = [1, 1]} : vector<1x160xbf16> to vector<1x76xbf16>
    %10 = vector.extract_strided_slice %5 {offsets = [0, 81], sizes = [1, 76], strides = [1, 1]} : vector<1x160xbf16> to vector<1x76xbf16>
    %11 = tpu.concatenate %9, %10 in 1 : vector<1x76xbf16>, vector<1x76xbf16> -> vector<1x152xbf16>
    %12 = vector.extract_strided_slice %5 {offsets = [0, 2], sizes = [1, 76], strides = [1, 1]} : vector<1x160xbf16> to vector<1x76xbf16>
    %13 = vector.extract_strided_slice %5 {offsets = [0, 82], sizes = [1, 76], strides = [1, 1]} : vector<1x160xbf16> to vector<1x76xbf16>
    %14 = tpu.concatenate %12, %13 in 1 : vector<1x76xbf16>, vector<1x76xbf16> -> vector<1x152xbf16>
    %15 = vector.extract_strided_slice %5 {offsets = [0, 3], sizes = [1, 76], strides = [1, 1]} : vector<1x160xbf16> to vector<1x76xbf16>
    %16 = vector.extract_strided_slice %5 {offsets = [0, 83], sizes = [1, 76], strides = [1, 1]} : vector<1x160xbf16> to vector<1x76xbf16>
    %17 = tpu.concatenate %15, %16 in 1 : vector<1x76xbf16>, vector<1x76xbf16> -> vector<1x152xbf16>
    %18 = vector.extract_strided_slice %5 {offsets = [0, 4], sizes = [1, 76], strides = [1, 1]} : vector<1x160xbf16> to vector<1x76xbf16>
    %19 = vector.extract_strided_slice %5 {offsets = [0, 84], sizes = [1, 76], strides = [1, 1]} : vector<1x160xbf16> to vector<1x76xbf16>
    %20 = tpu.concatenate %18, %19 in 1 : vector<1x76xbf16>, vector<1x76xbf16> -> vector<1x152xbf16>
    %21 = tpu.concatenate %8, %11, %14, %17, %20 in 0 : vector<1x152xbf16>, vector<1x152xbf16>, vector<1x152xbf16>, vector<1x152xbf16>, vector<1x152xbf16> -> vector<5x152xbf16>
    %c0_4 = arith.constant 0 : index
    %c0_5 = arith.constant 0 : index
    %22 = vector.load %arg2[%c0_4, %c0_5] : memref<64x5xbf16, #tpu.memory_space<vmem>>, vector<64x5xbf16>
    %cst = arith.constant dense<0.000000e+00> : vector<64x152xf32>
    %23 = tpu.matmul %22, %21, %cst {dimension_numbers = #tpu.dot_dimension_numbers<[1], [0], [0], [1], [0, 0, 1, 1], [], []>} : vector<64x5xbf16>, vector<5x152xbf16>, vector<64x152xf32> -> vector<64x152xf32>
    %c0_6 = arith.constant 0 : index
    %c0_7 = arith.constant 0 : index
    %24 = vector.load %arg3[%c0_6, %c0_7] : memref<64x1xf32, #tpu.memory_space<vmem>>, vector<64x1xf32>
    %25 = vector.broadcast %24 : vector<64x1xf32> to vector<64x152xf32>
    %26 = arith.addf %23, %25 : vector<64x152xf32>
    %cst_8 = arith.constant 0.000000e+00 : f32
    %27 = vector.broadcast %cst_8 : f32 to vector<64x152xf32>
    %28 = arith.maximumf %26, %27 : vector<64x152xf32>
    %29 = vector.extract_strided_slice %28 {offsets = [0, 0], sizes = [64, 74], strides = [1, 1]} : vector<64x152xf32> to vector<64x74xf32>
    %30 = vector.extract_strided_slice %28 {offsets = [0, 76], sizes = [64, 74], strides = [1, 1]} : vector<64x152xf32> to vector<64x74xf32>
    %31 = tpu.concatenate %29, %30 in 1 : vector<64x74xf32>, vector<64x74xf32> -> vector<64x148xf32>
    %32 = vector.extract_strided_slice %28 {offsets = [0, 1], sizes = [64, 74], strides = [1, 1]} : vector<64x152xf32> to vector<64x74xf32>
    %33 = vector.extract_strided_slice %28 {offsets = [0, 77], sizes = [64, 74], strides = [1, 1]} : vector<64x152xf32> to vector<64x74xf32>
    %34 = tpu.concatenate %32, %33 in 1 : vector<64x74xf32>, vector<64x74xf32> -> vector<64x148xf32>
    %35 = arith.maximumf %31, %34 : vector<64x148xf32>
    %36 = vector.extract_strided_slice %28 {offsets = [0, 2], sizes = [64, 74], strides = [1, 1]} : vector<64x152xf32> to vector<64x74xf32>
    %37 = vector.extract_strided_slice %28 {offsets = [0, 78], sizes = [64, 74], strides = [1, 1]} : vector<64x152xf32> to vector<64x74xf32>
    %38 = tpu.concatenate %36, %37 in 1 : vector<64x74xf32>, vector<64x74xf32> -> vector<64x148xf32>
    %39 = arith.maximumf %35, %38 : vector<64x148xf32>
    %40 = arith.truncf %39 : vector<64x148xf32> to vector<64x148xbf16>
    %41 = vector.extract_strided_slice %40 {offsets = [0, 0], sizes = [64, 70], strides = [1, 1]} : vector<64x148xbf16> to vector<64x70xbf16>
    %42 = vector.extract_strided_slice %40 {offsets = [0, 74], sizes = [64, 70], strides = [1, 1]} : vector<64x148xbf16> to vector<64x70xbf16>
    %43 = tpu.concatenate %41, %42 in 1 : vector<64x70xbf16>, vector<64x70xbf16> -> vector<64x140xbf16>
    %44 = vector.extract_strided_slice %40 {offsets = [0, 1], sizes = [64, 70], strides = [1, 1]} : vector<64x148xbf16> to vector<64x70xbf16>
    %45 = vector.extract_strided_slice %40 {offsets = [0, 75], sizes = [64, 70], strides = [1, 1]} : vector<64x148xbf16> to vector<64x70xbf16>
    %46 = tpu.concatenate %44, %45 in 1 : vector<64x70xbf16>, vector<64x70xbf16> -> vector<64x140xbf16>
    %47 = vector.extract_strided_slice %40 {offsets = [0, 2], sizes = [64, 70], strides = [1, 1]} : vector<64x148xbf16> to vector<64x70xbf16>
    %48 = vector.extract_strided_slice %40 {offsets = [0, 76], sizes = [64, 70], strides = [1, 1]} : vector<64x148xbf16> to vector<64x70xbf16>
    %49 = tpu.concatenate %47, %48 in 1 : vector<64x70xbf16>, vector<64x70xbf16> -> vector<64x140xbf16>
    %50 = vector.extract_strided_slice %40 {offsets = [0, 3], sizes = [64, 70], strides = [1, 1]} : vector<64x148xbf16> to vector<64x70xbf16>
    %51 = vector.extract_strided_slice %40 {offsets = [0, 77], sizes = [64, 70], strides = [1, 1]} : vector<64x148xbf16> to vector<64x70xbf16>
    %52 = tpu.concatenate %50, %51 in 1 : vector<64x70xbf16>, vector<64x70xbf16> -> vector<64x140xbf16>
    %53 = vector.extract_strided_slice %40 {offsets = [0, 4], sizes = [64, 70], strides = [1, 1]} : vector<64x148xbf16> to vector<64x70xbf16>
    %54 = vector.extract_strided_slice %40 {offsets = [0, 78], sizes = [64, 70], strides = [1, 1]} : vector<64x148xbf16> to vector<64x70xbf16>
    %55 = tpu.concatenate %53, %54 in 1 : vector<64x70xbf16>, vector<64x70xbf16> -> vector<64x140xbf16>
    %56 = tpu.concatenate %43, %46, %49, %52, %55 in 0 : vector<64x140xbf16>, vector<64x140xbf16>, vector<64x140xbf16>, vector<64x140xbf16>, vector<64x140xbf16> -> vector<320x140xbf16>
    %c0_9 = arith.constant 0 : index
    %c0_10 = arith.constant 0 : index
    %57 = vector.load %arg4[%c0_9, %c0_10] : memref<64x320xbf16, #tpu.memory_space<vmem>>, vector<64x320xbf16>
    %cst_11 = arith.constant dense<0.000000e+00> : vector<64x140xf32>
    %58 = tpu.matmul %57, %56, %cst_11 {dimension_numbers = #tpu.dot_dimension_numbers<[1], [0], [0], [1], [0, 0, 1, 1], [], []>} : vector<64x320xbf16>, vector<320x140xbf16>, vector<64x140xf32> -> vector<64x140xf32>
    %c0_12 = arith.constant 0 : index
    %c0_13 = arith.constant 0 : index
    %59 = vector.load %arg5[%c0_12, %c0_13] : memref<64x1xf32, #tpu.memory_space<vmem>>, vector<64x1xf32>
    %60 = vector.broadcast %59 : vector<64x1xf32> to vector<64x140xf32>
    %61 = arith.addf %58, %60 : vector<64x140xf32>
    %cst_14 = arith.constant 0.000000e+00 : f32
    %62 = vector.broadcast %cst_14 : f32 to vector<64x140xf32>
    %63 = arith.maximumf %61, %62 : vector<64x140xf32>
    %64 = vector.extract_strided_slice %63 {offsets = [0, 0], sizes = [64, 68], strides = [1, 1]} : vector<64x140xf32> to vector<64x68xf32>
    %65 = vector.extract_strided_slice %63 {offsets = [0, 70], sizes = [64, 68], strides = [1, 1]} : vector<64x140xf32> to vector<64x68xf32>
    %66 = tpu.concatenate %64, %65 in 1 : vector<64x68xf32>, vector<64x68xf32> -> vector<64x136xf32>
    %67 = vector.extract_strided_slice %63 {offsets = [0, 1], sizes = [64, 68], strides = [1, 1]} : vector<64x140xf32> to vector<64x68xf32>
    %68 = vector.extract_strided_slice %63 {offsets = [0, 71], sizes = [64, 68], strides = [1, 1]} : vector<64x140xf32> to vector<64x68xf32>
    %69 = tpu.concatenate %67, %68 in 1 : vector<64x68xf32>, vector<64x68xf32> -> vector<64x136xf32>
    %70 = arith.maximumf %66, %69 : vector<64x136xf32>
    %71 = vector.extract_strided_slice %63 {offsets = [0, 2], sizes = [64, 68], strides = [1, 1]} : vector<64x140xf32> to vector<64x68xf32>
    %72 = vector.extract_strided_slice %63 {offsets = [0, 72], sizes = [64, 68], strides = [1, 1]} : vector<64x140xf32> to vector<64x68xf32>
    %73 = tpu.concatenate %71, %72 in 1 : vector<64x68xf32>, vector<64x68xf32> -> vector<64x136xf32>
    %74 = arith.maximumf %70, %73 : vector<64x136xf32>
    %75 = arith.truncf %74 : vector<64x136xf32> to vector<64x136xbf16>
    %76 = vector.extract_strided_slice %75 {offsets = [0, 0], sizes = [64, 60], strides = [1, 1]} : vector<64x136xbf16> to vector<64x60xbf16>
    %77 = vector.extract_strided_slice %75 {offsets = [0, 68], sizes = [64, 60], strides = [1, 1]} : vector<64x136xbf16> to vector<64x60xbf16>
    %78 = tpu.concatenate %76, %77 in 1 : vector<64x60xbf16>, vector<64x60xbf16> -> vector<64x120xbf16>
    %79 = vector.extract_strided_slice %75 {offsets = [0, 2], sizes = [64, 60], strides = [1, 1]} : vector<64x136xbf16> to vector<64x60xbf16>
    %80 = vector.extract_strided_slice %75 {offsets = [0, 70], sizes = [64, 60], strides = [1, 1]} : vector<64x136xbf16> to vector<64x60xbf16>
    %81 = tpu.concatenate %79, %80 in 1 : vector<64x60xbf16>, vector<64x60xbf16> -> vector<64x120xbf16>
    %82 = vector.extract_strided_slice %75 {offsets = [0, 4], sizes = [64, 60], strides = [1, 1]} : vector<64x136xbf16> to vector<64x60xbf16>
    %83 = vector.extract_strided_slice %75 {offsets = [0, 72], sizes = [64, 60], strides = [1, 1]} : vector<64x136xbf16> to vector<64x60xbf16>
    %84 = tpu.concatenate %82, %83 in 1 : vector<64x60xbf16>, vector<64x60xbf16> -> vector<64x120xbf16>
    %85 = vector.extract_strided_slice %75 {offsets = [0, 6], sizes = [64, 60], strides = [1, 1]} : vector<64x136xbf16> to vector<64x60xbf16>
    %86 = vector.extract_strided_slice %75 {offsets = [0, 74], sizes = [64, 60], strides = [1, 1]} : vector<64x136xbf16> to vector<64x60xbf16>
    %87 = tpu.concatenate %85, %86 in 1 : vector<64x60xbf16>, vector<64x60xbf16> -> vector<64x120xbf16>
    %88 = vector.extract_strided_slice %75 {offsets = [0, 8], sizes = [64, 60], strides = [1, 1]} : vector<64x136xbf16> to vector<64x60xbf16>
    %89 = vector.extract_strided_slice %75 {offsets = [0, 76], sizes = [64, 60], strides = [1, 1]} : vector<64x136xbf16> to vector<64x60xbf16>
    %90 = tpu.concatenate %88, %89 in 1 : vector<64x60xbf16>, vector<64x60xbf16> -> vector<64x120xbf16>
    %91 = tpu.concatenate %78, %81, %84, %87, %90 in 0 : vector<64x120xbf16>, vector<64x120xbf16>, vector<64x120xbf16>, vector<64x120xbf16>, vector<64x120xbf16> -> vector<320x120xbf16>
    %c0_15 = arith.constant 0 : index
    %c0_16 = arith.constant 0 : index
    %92 = vector.load %arg6[%c0_15, %c0_16] : memref<64x320xbf16, #tpu.memory_space<vmem>>, vector<64x320xbf16>
    %cst_17 = arith.constant dense<0.000000e+00> : vector<64x120xf32>
    %93 = tpu.matmul %92, %91, %cst_17 {dimension_numbers = #tpu.dot_dimension_numbers<[1], [0], [0], [1], [0, 0, 1, 1], [], []>} : vector<64x320xbf16>, vector<320x120xbf16>, vector<64x120xf32> -> vector<64x120xf32>
    %c0_18 = arith.constant 0 : index
    %c0_19 = arith.constant 0 : index
    %94 = vector.load %arg7[%c0_18, %c0_19] : memref<64x1xf32, #tpu.memory_space<vmem>>, vector<64x1xf32>
    %95 = vector.broadcast %94 : vector<64x1xf32> to vector<64x120xf32>
    %96 = arith.addf %93, %95 : vector<64x120xf32>
    %cst_20 = arith.constant 0.000000e+00 : f32
    %97 = vector.broadcast %cst_20 : f32 to vector<64x120xf32>
    %98 = arith.maximumf %96, %97 : vector<64x120xf32>
    %99 = vector.extract_strided_slice %98 {offsets = [0, 0], sizes = [64, 58], strides = [1, 1]} : vector<64x120xf32> to vector<64x58xf32>
    %100 = vector.extract_strided_slice %98 {offsets = [0, 60], sizes = [64, 58], strides = [1, 1]} : vector<64x120xf32> to vector<64x58xf32>
    %101 = tpu.concatenate %99, %100 in 1 : vector<64x58xf32>, vector<64x58xf32> -> vector<64x116xf32>
    %102 = vector.extract_strided_slice %98 {offsets = [0, 1], sizes = [64, 58], strides = [1, 1]} : vector<64x120xf32> to vector<64x58xf32>
    %103 = vector.extract_strided_slice %98 {offsets = [0, 61], sizes = [64, 58], strides = [1, 1]} : vector<64x120xf32> to vector<64x58xf32>
    %104 = tpu.concatenate %102, %103 in 1 : vector<64x58xf32>, vector<64x58xf32> -> vector<64x116xf32>
    %105 = arith.maximumf %101, %104 : vector<64x116xf32>
    %106 = vector.extract_strided_slice %98 {offsets = [0, 2], sizes = [64, 58], strides = [1, 1]} : vector<64x120xf32> to vector<64x58xf32>
    %107 = vector.extract_strided_slice %98 {offsets = [0, 62], sizes = [64, 58], strides = [1, 1]} : vector<64x120xf32> to vector<64x58xf32>
    %108 = tpu.concatenate %106, %107 in 1 : vector<64x58xf32>, vector<64x58xf32> -> vector<64x116xf32>
    %109 = arith.maximumf %105, %108 : vector<64x116xf32>
    %110 = arith.truncf %109 : vector<64x116xf32> to vector<64x116xbf16>
    %111 = vector.extract_strided_slice %110 {offsets = [0, 0], sizes = [64, 50], strides = [1, 1]} : vector<64x116xbf16> to vector<64x50xbf16>
    %112 = vector.extract_strided_slice %110 {offsets = [0, 58], sizes = [64, 50], strides = [1, 1]} : vector<64x116xbf16> to vector<64x50xbf16>
    %113 = tpu.concatenate %111, %112 in 1 : vector<64x50xbf16>, vector<64x50xbf16> -> vector<64x100xbf16>
    %114 = vector.extract_strided_slice %110 {offsets = [0, 2], sizes = [64, 50], strides = [1, 1]} : vector<64x116xbf16> to vector<64x50xbf16>
    %115 = vector.extract_strided_slice %110 {offsets = [0, 60], sizes = [64, 50], strides = [1, 1]} : vector<64x116xbf16> to vector<64x50xbf16>
    %116 = tpu.concatenate %114, %115 in 1 : vector<64x50xbf16>, vector<64x50xbf16> -> vector<64x100xbf16>
    %117 = vector.extract_strided_slice %110 {offsets = [0, 4], sizes = [64, 50], strides = [1, 1]} : vector<64x116xbf16> to vector<64x50xbf16>
    %118 = vector.extract_strided_slice %110 {offsets = [0, 62], sizes = [64, 50], strides = [1, 1]} : vector<64x116xbf16> to vector<64x50xbf16>
    %119 = tpu.concatenate %117, %118 in 1 : vector<64x50xbf16>, vector<64x50xbf16> -> vector<64x100xbf16>
    %120 = vector.extract_strided_slice %110 {offsets = [0, 6], sizes = [64, 50], strides = [1, 1]} : vector<64x116xbf16> to vector<64x50xbf16>
    %121 = vector.extract_strided_slice %110 {offsets = [0, 64], sizes = [64, 50], strides = [1, 1]} : vector<64x116xbf16> to vector<64x50xbf16>
    %122 = tpu.concatenate %120, %121 in 1 : vector<64x50xbf16>, vector<64x50xbf16> -> vector<64x100xbf16>
    %123 = vector.extract_strided_slice %110 {offsets = [0, 8], sizes = [64, 50], strides = [1, 1]} : vector<64x116xbf16> to vector<64x50xbf16>
    %124 = vector.extract_strided_slice %110 {offsets = [0, 66], sizes = [64, 50], strides = [1, 1]} : vector<64x116xbf16> to vector<64x50xbf16>
    %125 = tpu.concatenate %123, %124 in 1 : vector<64x50xbf16>, vector<64x50xbf16> -> vector<64x100xbf16>
    %126 = tpu.concatenate %113, %116, %119, %122, %125 in 0 : vector<64x100xbf16>, vector<64x100xbf16>, vector<64x100xbf16>, vector<64x100xbf16>, vector<64x100xbf16> -> vector<320x100xbf16>
    %c0_21 = arith.constant 0 : index
    %c0_22 = arith.constant 0 : index
    %127 = vector.load %arg8[%c0_21, %c0_22] : memref<64x320xbf16, #tpu.memory_space<vmem>>, vector<64x320xbf16>
    %cst_23 = arith.constant dense<0.000000e+00> : vector<64x100xf32>
    %128 = tpu.matmul %127, %126, %cst_23 {dimension_numbers = #tpu.dot_dimension_numbers<[1], [0], [0], [1], [0, 0, 1, 1], [], []>} : vector<64x320xbf16>, vector<320x100xbf16>, vector<64x100xf32> -> vector<64x100xf32>
    %c0_24 = arith.constant 0 : index
    %c0_25 = arith.constant 0 : index
    %129 = vector.load %arg9[%c0_24, %c0_25] : memref<64x1xf32, #tpu.memory_space<vmem>>, vector<64x1xf32>
    %130 = vector.broadcast %129 : vector<64x1xf32> to vector<64x100xf32>
    %131 = arith.addf %128, %130 : vector<64x100xf32>
    %cst_26 = arith.constant 0.000000e+00 : f32
    %132 = vector.broadcast %cst_26 : f32 to vector<64x100xf32>
    %133 = arith.maximumf %131, %132 : vector<64x100xf32>
    %134 = vector.extract_strided_slice %133 {offsets = [0, 0], sizes = [64, 48], strides = [1, 1]} : vector<64x100xf32> to vector<64x48xf32>
    %135 = vector.extract_strided_slice %133 {offsets = [0, 50], sizes = [64, 48], strides = [1, 1]} : vector<64x100xf32> to vector<64x48xf32>
    %136 = tpu.concatenate %134, %135 in 1 : vector<64x48xf32>, vector<64x48xf32> -> vector<64x96xf32>
    %137 = vector.extract_strided_slice %133 {offsets = [0, 1], sizes = [64, 48], strides = [1, 1]} : vector<64x100xf32> to vector<64x48xf32>
    %138 = vector.extract_strided_slice %133 {offsets = [0, 51], sizes = [64, 48], strides = [1, 1]} : vector<64x100xf32> to vector<64x48xf32>
    %139 = tpu.concatenate %137, %138 in 1 : vector<64x48xf32>, vector<64x48xf32> -> vector<64x96xf32>
    %140 = arith.maximumf %136, %139 : vector<64x96xf32>
    %141 = vector.extract_strided_slice %133 {offsets = [0, 2], sizes = [64, 48], strides = [1, 1]} : vector<64x100xf32> to vector<64x48xf32>
    %142 = vector.extract_strided_slice %133 {offsets = [0, 52], sizes = [64, 48], strides = [1, 1]} : vector<64x100xf32> to vector<64x48xf32>
    %143 = tpu.concatenate %141, %142 in 1 : vector<64x48xf32>, vector<64x48xf32> -> vector<64x96xf32>
    %144 = arith.maximumf %140, %143 : vector<64x96xf32>
    %145 = arith.truncf %144 : vector<64x96xf32> to vector<64x96xbf16>
    %c0_27 = arith.constant 0 : index
    %c0_28 = arith.constant 0 : index
    %146 = vector.load %arg10[%c0_27, %c0_28] : memref<64x96xbf16, #tpu.memory_space<vmem>>, vector<64x96xbf16>
    tpu.vector_store %arg10[%c0_27, %c0_28], %145 {strides = array<i32>} : memref<64x96xbf16, #tpu.memory_space<vmem>>, vector<64x96xbf16>,
    return
  }
  func.func @transform_0(%arg0: i32) -> (i32, i32, i32) {
    %c0_i32 = arith.constant 0 : i32
    %c0_i32_0 = arith.constant 0 : i32
    %c0_i32_1 = arith.constant 0 : i32
    return %arg0, %c0_i32, %c0_i32_0 : i32, i32, i32
  }
  func.func @transform_1(%arg0: i32) -> (i32, i32) {
    %c0_i32 = arith.constant 0 : i32
    %c0_i32_0 = arith.constant 0 : i32
    %c0_i32_1 = arith.constant 0 : i32
    return %c0_i32, %c0_i32_0 : i32, i32
  }
  func.func @transform_2(%arg0: i32) -> (i32, i32) {
    %c0_i32 = arith.constant 0 : i32
    %c0_i32_0 = arith.constant 0 : i32
    %c0_i32_1 = arith.constant 0 : i32
    return %c0_i32, %c0_i32_0 : i32, i32
  }
  func.func @transform_3(%arg0: i32) -> (i32, i32) {
    %c0_i32 = arith.constant 0 : i32
    %c0_i32_0 = arith.constant 0 : i32
    %c0_i32_1 = arith.constant 0 : i32
    return %c0_i32, %c0_i32_0 : i32, i32
  }
  func.func @transform_4(%arg0: i32) -> (i32, i32) {
    %c0_i32 = arith.constant 0 : i32
    %c0_i32_0 = arith.constant 0 : i32
    %c0_i32_1 = arith.constant 0 : i32
    return %c0_i32, %c0_i32_0 : i32, i32
  }
  func.func @transform_5(%arg0: i32) -> (i32, i32) {
    %c0_i32 = arith.constant 0 : i32
    %c0_i32_0 = arith.constant 0 : i32
    %c0_i32_1 = arith.constant 0 : i32
    return %c0_i32, %c0_i32_0 : i32, i32
  }
  func.func @transform_6(%arg0: i32) -> (i32, i32) {
    %c0_i32 = arith.constant 0 : i32
    %c0_i32_0 = arith.constant 0 : i32
    %c0_i32_1 = arith.constant 0 : i32
    return %c0_i32, %c0_i32_0 : i32, i32
  }
  func.func @transform_7(%arg0: i32) -> (i32, i32) {
    %c0_i32 = arith.constant 0 : i32
    %c0_i32_0 = arith.constant 0 : i32
    %c0_i32_1 = arith.constant 0 : i32
    return %c0_i32, %c0_i32_0 : i32, i32
  }
  func.func @transform_8(%arg0: i32) -> (i32, i32) {
    %c0_i32 = arith.constant 0 : i32
    %c0_i32_0 = arith.constant 0 : i32
    %c0_i32_1 = arith.constant 0 : i32
    return %c0_i32, %c0_i32_0 : i32, i32
  }
  func.func @transform_9(%arg0: i32) -> (i32, i32) {
    %c0_i32 = arith.constant 0 : i32
    %c0_i32_0 = arith.constant 0 : i32
    return %c0_i32, %arg0 : i32, i32
  }
}

</mosaic_0001>

<llo_original>
// kernel: tpu_custom_call.1
$region0: #{tpu_custom_call.1}
  #allocation0 [shape = 'u32[]', space=smem, size = 0x4, offset = 0x4, fixed_abs, tag = 'smem constant byte address 0x4 - core index']
  #allocation1 [shape = 'u32[144,128]{1,0:T(1,128)}', space=vmem, size = 0x12000, scoped, tag = 'internal scratch']
  %s0 = inlined_call_operand.vmem [shape: f32[2,1,80], index: 0, kind: input, shape index: {}]
  %s1 = inlined_call_operand.vmem [shape: bf16[64,5], index: 1, kind: input, shape index: {}]
  %s2 = inlined_call_operand.vmem [shape: f32[64,1], index: 2, kind: input, shape index: {}]
  %s3 = inlined_call_operand.vmem [shape: bf16[64,320], index: 3, kind: input, shape index: {}]
  %s4 = inlined_call_operand.vmem [shape: f32[64,1], index: 4, kind: input, shape index: {}]
  %s5 = inlined_call_operand.vmem [shape: bf16[64,320], index: 5, kind: input, shape index: {}]
  %s6 = inlined_call_operand.vmem [shape: f32[64,1], index: 6, kind: input, shape index: {}]
  %s7 = inlined_call_operand.vmem [shape: bf16[64,320], index: 7, kind: input, shape index: {}]
  %s8 = inlined_call_operand.vmem [shape: f32[64,1], index: 8, kind: input, shape index: {}]
  %s9 = inlined_call_operand.hbm [shape: bf16[64,96], index: 9, kind: output, shape index: {}]
  %s10 = sld [smem:[#allocation0]]
  $region46: #{tpu_custom_call.1} parent=0
    _
  %s12 = ssub.s32 1, %s10
  %s13 = scalar_select 0, %s12, %s10
  $region1: #{tpu_custom_call.1} parent=0
    #allocation2 [shape = 'u8[16384]{0}', space=vmem, size = 0x4000, scoped, tag = 'output window, operand 0, single buffered']
    #allocation3 [shape = 's32[1]{0}', space=sflag, size = 0x4, scoped, tag = 'scoped memory for tpu_custom_call.1']
    %14 = vsyncpa [#allocation3], 0
    // Predicated region
    $region2: #{tpu_custom_call.1} parent=1 // pred_check
      _
    $region3: #{tpu_custom_call.1} parent=1 // pred_check_branch
      %16 = sbr.rel (0) target = $region5
    $region4: #{tpu_custom_call.1} parent=1 // pred_region
      _
    $region5: #{tpu_custom_call.1} parent=1 // pred_fallthru
      _
    // Predicated region
    $region6: #{tpu_custom_call.1} parent=1 // pred_check
      _
    $region7: #{tpu_custom_call.1} parent=1 // pred_check_branch
      %18 = sbr.rel (0) target = $region9
    $region8: #{tpu_custom_call.1} parent=1 // pred_region
      _
    $region9: #{tpu_custom_call.1} parent=1 // pred_fallthru
      _
    // Predicated region
    $region10: #{tpu_custom_call.1} parent=1 // pred_check
      _
    $region11: #{tpu_custom_call.1} parent=1 // pred_check_branch
      %20 = sbr.rel (0) target = $region13
    $region12: #{tpu_custom_call.1} parent=1 // pred_region
      _
    $region13: #{tpu_custom_call.1} parent=1 // pred_fallthru
      _
    // Predicated region
    $region14: #{tpu_custom_call.1} parent=1 // pred_check
      _
    $region15: #{tpu_custom_call.1} parent=1 // pred_check_branch
      %22 = sbr.rel (0) target = $region17
    $region16: #{tpu_custom_call.1} parent=1 // pred_region
      _
    $region17: #{tpu_custom_call.1} parent=1 // pred_fallthru
      _
    // Predicated region
    $region18: #{tpu_custom_call.1} parent=1 // pred_check
      _
    $region19: #{tpu_custom_call.1} parent=1 // pred_check_branch
      %24 = sbr.rel (0) target = $region21
    $region20: #{tpu_custom_call.1} parent=1 // pred_region
      _
    $region21: #{tpu_custom_call.1} parent=1 // pred_fallthru
      _
    // Predicated region
    $region22: #{tpu_custom_call.1} parent=1 // pred_check
      _
    $region23: #{tpu_custom_call.1} parent=1 // pred_check_branch
      %26 = sbr.rel (0) target = $region25
    $region24: #{tpu_custom_call.1} parent=1 // pred_region
      _
    $region25: #{tpu_custom_call.1} parent=1 // pred_fallthru
      _
    // Predicated region
    $region26: #{tpu_custom_call.1} parent=1 // pred_check
      _
    $region27: #{tpu_custom_call.1} parent=1 // pred_check_branch
      %28 = sbr.rel (0) target = $region29
    $region28: #{tpu_custom_call.1} parent=1 // pred_region
      _
    $region29: #{tpu_custom_call.1} parent=1 // pred_fallthru
      _
    // Predicated region
    $region30: #{tpu_custom_call.1} parent=1 // pred_check
      _
    $region31: #{tpu_custom_call.1} parent=1 // pred_check_branch
      %30 = sbr.rel (0) target = $region33
    $region32: #{tpu_custom_call.1} parent=1 // pred_region
      _
    $region33: #{tpu_custom_call.1} parent=1 // pred_fallthru
      _
    // Predicated region
    $region34: #{tpu_custom_call.1} parent=1 // pred_check
      _
    $region35: #{tpu_custom_call.1} parent=1 // pred_check_branch
      %32 = sbr.rel (0) target = $region37
    $region36: #{tpu_custom_call.1} parent=1 // pred_region
      _
    $region37: #{tpu_custom_call.1} parent=1 // pred_fallthru
      _
    %v34 = vld [vmem:[%s0] sm:$0x1]
    %s35 = scalar_lea.vmem %s0, 1
    %v36 = vld [vmem:[%s35] sm:$0x1]
    %v38 = vlaneseq
    %v39 = vshrl.u32 %v38, 7
    %v40 = vsub.s32 0, %v39
    %v41 = vrot.slane %v36, %v40
    %42 = vrot.lane.b32.xlu0 %v41, 80
    %v43 = vpop.permute.xlu0 %42
    %vm45 = vcmask 654336
    %v46 = vsel %vm45, %v34, %v43
    %v47 = vpack.c.bf16 %v46, %v46
    %v48 = vpack.c.bf16 %v43, %v43
    %51 = vrot.lane.b32.xlu0 %v47, 124
    %v52 = vpop.permute.xlu0 %51
    %53 = vrot.lane.b32.xlu0 %v48, 124
    %v54 = vpop.permute.xlu0 %53
    %vm55 = vcmask 1014784
    %v56 = vsel %vm55, %v52, %v54
    %vm58 = vcmask 621568
    %v61 = vsel %vm58, %v47, %v56
    %63 = vrot.lane.b32.xlu0 %v47, 127
    %v64 = vpop.permute.xlu0 %63
    %65 = vrot.lane.b32.xlu0 %v47, 123
    %v66 = vpop.permute.xlu0 %65
    %67 = vrot.lane.b32.xlu0 %v48, 123
    %v68 = vpop.permute.xlu0 %67
    %vm69 = vcmask 1006592
    %v70 = vsel %vm69, %v66, %v68
    %v73 = vsel %vm58, %v64, %v70
    %74 = vrot.lane.b32.xlu0 %v47, 126
    %v75 = vpop.permute.xlu0 %74
    %76 = vrot.lane.b32.xlu0 %v47, 122
    %v77 = vpop.permute.xlu0 %76
    %78 = vrot.lane.b32.xlu0 %v48, 122
    %v79 = vpop.permute.xlu0 %78
    %vm80 = vcmask 998400
    %v81 = vsel %vm80, %v77, %v79
    %v84 = vsel %vm58, %v75, %v81
    %85 = vrot.lane.b32.xlu0 %v47, 125
    %v86 = vpop.permute.xlu0 %85
    %87 = vrot.lane.b32.xlu0 %v47, 121
    %v88 = vpop.permute.xlu0 %87
    %89 = vrot.lane.b32.xlu0 %v48, 121
    %v90 = vpop.permute.xlu0 %89
    %vm91 = vcmask 990208
    %v92 = vsel %vm91, %v88, %v90
    %v95 = vsel %vm58, %v86, %v92
    %96 = vrot.lane.b32.xlu0 %v47, 120
    %v97 = vpop.permute.xlu0 %96
    %98 = vrot.lane.b32.xlu0 %v48, 120
    %v99 = vpop.permute.xlu0 %98
    %vm100 = vcmask 982016
    %v101 = vsel %vm100, %v97, %v99
    %v104 = vsel %vm58, %v52, %v101
    %v105 = vshll.u32 %v73, 16
    %v108 = vshll.u32 %v68, 16
    %v113 = vrot.slane %v84, 7
    %v114 = vrot.slane %v79, 7
    %v115 = vshll.u32 %v95, 16
    %v117 = vrot.slane %v115, 7
    %v119 = vshll.u32 %v90, 16
    %v121 = vrot.slane %v119, 7
    %v125 = vrot.slane %v104, 6
    %v126 = vrot.slane %v99, 6
    %vm127 = vcmask 1040384
    %vm128 = vsmask.f32 256
    %vm129 = vmand %vm127, %vm128
    %v130 = vsel %vm129, %v61, %v105
    %v131 = vsel %vm129, %v54, %v108
    %vm132 = vcmask 1040384
    %v135 = vsel %vm132, %v130, %v113
    %v139 = vsel %vm132, %v131, %v114
    %vm141 = vcmask 1041408
    %vm142 = vsmask.f32 1280
    %vm143 = vmand %vm141, %vm142
    %v144 = vsel %vm143, %v135, %v117
    %v145 = vsel %vm143, %v139, %v121
    %vm146 = vcmask 1041408
    %v149 = vsel %vm146, %v144, %v125
    %v152 = vsel %vm146, %v145, %v126
    %v153 = vld [vmem:[%s1] sm:$0xf]
    %v154 = vld [vmem:[%s1 + $0x4] sm:$0xf]
    %v155 = vld [vmem:[%s1 + $0x8] sm:$0xf]
    %v156 = vld [vmem:[%s1 + $0xc] sm:$0xf]
    %v157 = vld [vmem:[%s1 + $0x10] sm:$0xf]
    %v158 = vld [vmem:[%s1 + $0x14] sm:$0xf]
    %v159 = vld [vmem:[%s1 + $0x18] sm:$0xf]
    %v160 = vld [vmem:[%s1 + $0x1c] sm:$0xf]
    %v161 = vld [vmem:[%s2] sm:$0xff]
    %v162 = vld [vmem:[%s2 + $0x8] sm:$0xff]
    %v163 = vld [vmem:[%s2 + $0x10] sm:$0xff]
    %v164 = vld [vmem:[%s2 + $0x18] sm:$0xff]
    %v165 = vld [vmem:[%s2 + $0x20] sm:$0xff]
    %v166 = vld [vmem:[%s2 + $0x28] sm:$0xff]
    %v167 = vld [vmem:[%s2 + $0x30] sm:$0xff]
    %v168 = vld [vmem:[%s2 + $0x38] sm:$0xff]
    %170 = vset.pattern.permute.xlu0 0
    %171 = vperm.xlu0 %170, %v161
    %v172 = vpop.permute.xlu0 %171
    %175 = vset.pattern.permute.xlu0 0
    %176 = vperm.xlu0 %175, %v162
    %v177 = vpop.permute.xlu0 %176
    %180 = vset.pattern.permute.xlu0 0
    %181 = vperm.xlu0 %180, %v163
    %v182 = vpop.permute.xlu0 %181
    %185 = vset.pattern.permute.xlu0 0
    %186 = vperm.xlu0 %185, %v164
    %v187 = vpop.permute.xlu0 %186
    %190 = vset.pattern.permute.xlu0 0
    %191 = vperm.xlu0 %190, %v165
    %v192 = vpop.permute.xlu0 %191
    %195 = vset.pattern.permute.xlu0 0
    %196 = vperm.xlu0 %195, %v166
    %v197 = vpop.permute.xlu0 %196
    %200 = vset.pattern.permute.xlu0 0
    %201 = vperm.xlu0 %200, %v167
    %v202 = vpop.permute.xlu0 %201
    %205 = vset.pattern.permute.xlu0 0
    %206 = vperm.xlu0 %205, %v168
    %v207 = vpop.permute.xlu0 %206
    %v217 = vunpack.c.l.b16 %v153
    %v218 = vunpack.c.l.b16 %v154
    %v219 = vunpack.c.l.b16 %v155
    %v220 = vunpack.c.l.b16 %v156
    %v221 = vunpack.c.l.b16 %v157
    %v222 = vunpack.c.l.b16 %v158
    %v223 = vunpack.c.l.b16 %v159
    %v224 = vunpack.c.l.b16 %v160
    %v225 = vpack.c.b16 %v218, %v217
    %v226 = vpack.c.b16 %v220, %v219
    %v227 = vpack.c.b16 %v222, %v221
    %v228 = vpack.c.b16 %v224, %v223
    %vm229 = vcmask 39936
    %v231 = vsel %vm229, %v225, 0
    %v234 = vsel %vm229, %v226, 0
    %v237 = vsel %vm229, %v227, 0
    %v240 = vsel %vm229, %v228, 0
    %vm242 = vcmask 1042432
    %v243 = vsel %vm146, 4294967295, 65535
    %v244 = vsel %vm242, %v243, 0
    %v245 = vand.u32 %v149, %v244
    %v247 = vand.u32 %v152, %v244
    %249 = vmatprep.subr.bf16.mxu0 0
    %250 = vmatpush1.bf16.msra.mxu0 0
    %251 = vmatprep.subr.bf16.mxu0 0
    %252 = vmatpush1.bf16.msra.mxu0 0
    %253 = vmatprep.subr.bf16.mxu0 0
    %254 = vmatpush1.bf16.msra.mxu0 0
    %255 = vmatprep.subr.bf16.mxu0 0
    %256 = vmatpush1.bf16.msra.mxu0 0
    %257 = vmatprep.subr.bf16.mxu0 0
    %258 = vmatpush1.bf16.msra.mxu0 0
    %259 = vmatprep.subr.bf16.mxu0 0
    %260 = vmatpush1.bf16.msra.mxu0 0
    %261 = vmatprep.subr.bf16.mxu0 0
    %262 = vmatpush1.bf16.msra.mxu0 0
    %263 = vmatprep.subr.bf16.mxu0 %v247
    %264 = vmatpush1.bf16.msra.mxu0 %v245
    %265 = vmatprep.subr.bf16.mxu0 0
    %266 = vmatpush2.bf16.msra.mxu0 0
    %267 = vmatprep.subr.bf16.mxu0 0
    %268 = vmatpush2.bf16.msra.mxu0 0
    %269 = vmatprep.subr.bf16.mxu0 0
    %270 = vmatpush2.bf16.msra.mxu0 0
    %271 = vmatprep.subr.bf16.mxu0 0
    %272 = vmatpush2.bf16.msra.mxu0 0
    %273 = vmatprep.subr.bf16.mxu0 0
    %274 = vmatpush2.bf16.msra.mxu0 0
    %275 = vmatprep.subr.bf16.mxu0 0
    %276 = vmatpush2.bf16.msra.mxu0 0
    %277 = vmatprep.subr.bf16.mxu0 0
    %278 = vmatpush2.bf16.msra.mxu0 0
    %279 = vmatprep.subr.bf16.mxu0 0
    %280 = vmatpush2.bf16.msra.mxu0 0
    %281 = vmatprep.mubr.bf16.mxu0 0
    %282 = vmatmul.mubr.bf16.gmra.mxu0 %v231
    %v283 = vpop.f32.mrf.mxu0
    %v284 = vadd.f32 %v172, %v283
    %v285 = vpop.f32.mrf.mxu0
    %v286 = vadd.f32 %v172, %v285
    %v287 = vpop.f32.mrf.mxu0
    %v288 = vadd.f32 %v177, %v287
    %v289 = vpop.f32.mrf.mxu0
    %v290 = vadd.f32 %v177, %v289
    %291 = vmatprep.mubr.bf16.mxu0 0
    %292 = vmatmul.mubr.bf16.gmra.mxu0 %v234
    %v293 = vpop.f32.mrf.mxu0
    %v294 = vadd.f32 %v182, %v293
    %v295 = vpop.f32.mrf.mxu0
    %v296 = vadd.f32 %v182, %v295
    %v297 = vpop.f32.mrf.mxu0
    %v298 = vadd.f32 %v187, %v297
    %v299 = vpop.f32.mrf.mxu0
    %v300 = vadd.f32 %v187, %v299
    %301 = vmatprep.mubr.bf16.mxu0 0
    %302 = vmatmul.mubr.bf16.gmra.mxu0 %v237
    %v303 = vpop.f32.mrf.mxu0
    %v304 = vadd.f32 %v192, %v303
    %v305 = vpop.f32.mrf.mxu0
    %v306 = vadd.f32 %v192, %v305
    %v307 = vpop.f32.mrf.mxu0
    %v308 = vadd.f32 %v197, %v307
    %v309 = vpop.f32.mrf.mxu0
    %v310 = vadd.f32 %v197, %v309
    %311 = vmatprep.mubr.bf16.mxu0 0
    %312 = vmatmul.mubr.bf16.gmra.mxu0 %v240
    %v313 = vpop.f32.mrf.mxu0
    %v314 = vadd.f32 %v202, %v313
    %v315 = vpop.f32.mrf.mxu0
    %v316 = vadd.f32 %v202, %v315
    %v317 = vpop.f32.mrf.mxu0
    %v318 = vadd.f32 %v207, %v317
    %v319 = vpop.f32.mrf.mxu0
    %v320 = vadd.f32 %v207, %v319
    %321 = vdwg.mxu0
    %v322 = vmax.f32 %v284, 0.0
    %v323 = vmax.f32 %v286, 0.0
    %v324 = vmax.f32 %v288, 0.0
    %v325 = vmax.f32 %v290, 0.0
    %v326 = vmax.f32 %v294, 0.0
    %v327 = vmax.f32 %v296, 0.0
    %v328 = vmax.f32 %v298, 0.0
    %v329 = vmax.f32 %v300, 0.0
    %v330 = vmax.f32 %v304, 0.0
    %v331 = vmax.f32 %v306, 0.0
    %v332 = vmax.f32 %v308, 0.0
    %v333 = vmax.f32 %v310, 0.0
    %v334 = vmax.f32 %v314, 0.0
    %v335 = vmax.f32 %v316, 0.0
    %v336 = vmax.f32 %v318, 0.0
    %v337 = vmax.f32 %v320, 0.0
    %354 = vrot.lane.b32.xlu0 %v322, 126
    %v355 = vpop.permute.xlu0 %354
    %356 = vrot.lane.b32.xlu0 %v323, 126
    %v357 = vpop.permute.xlu0 %356
    %358 = vrot.lane.b32.xlu0 %v324, 126
    %v359 = vpop.permute.xlu0 %358
    %360 = vrot.lane.b32.xlu0 %v325, 126
    %v361 = vpop.permute.xlu0 %360
    %362 = vrot.lane.b32.xlu0 %v326, 126
    %v363 = vpop.permute.xlu0 %362
    %364 = vrot.lane.b32.xlu0 %v327, 126
    %v365 = vpop.permute.xlu0 %364
    %366 = vrot.lane.b32.xlu0 %v328, 126
    %v367 = vpop.permute.xlu0 %366
    %368 = vrot.lane.b32.xlu0 %v329, 126
    %v369 = vpop.permute.xlu0 %368
    %370 = vrot.lane.b32.xlu0 %v330, 126
    %v371 = vpop.permute.xlu0 %370
    %372 = vrot.lane.b32.xlu0 %v331, 126
    %v373 = vpop.permute.xlu0 %372
    %374 = vrot.lane.b32.xlu0 %v332, 126
    %v375 = vpop.permute.xlu0 %374
    %376 = vrot.lane.b32.xlu0 %v333, 126
    %v377 = vpop.permute.xlu0 %376
    %378 = vrot.lane.b32.xlu0 %v334, 126
    %v379 = vpop.permute.xlu0 %378
    %380 = vrot.lane.b32.xlu0 %v335, 126
    %v381 = vpop.permute.xlu0 %380
    %382 = vrot.lane.b32.xlu0 %v336, 126
    %v383 = vpop.permute.xlu0 %382
    %384 = vrot.lane.b32.xlu0 %v337, 126
    %v385 = vpop.permute.xlu0 %384
    %vm386 = vcmask 1031168
    %v387 = vsel %vm386, %v355, %v357
    %v388 = vsel %vm386, %v359, %v361
    %v389 = vsel %vm386, %v363, %v365
    %v390 = vsel %vm386, %v367, %v369
    %v391 = vsel %vm386, %v371, %v373
    %v392 = vsel %vm386, %v375, %v377
    %v393 = vsel %vm386, %v379, %v381
    %v394 = vsel %vm386, %v383, %v385
    %vm411 = vcmask 605184
    %v412 = vsel %vm411, %v322, %v387
    %v413 = vsel %vm411, %v324, %v388
    %v414 = vsel %vm411, %v326, %v389
    %v415 = vsel %vm411, %v328, %v390
    %v416 = vsel %vm411, %v330, %v391
    %v417 = vsel %vm411, %v332, %v392
    %v418 = vsel %vm411, %v334, %v393
    %v419 = vsel %vm411, %v336, %v394
    %420 = vrot.lane.b32.xlu0 %v322, 127
    %v421 = vpop.permute.xlu0 %420
    %422 = vrot.lane.b32.xlu0 %v324, 127
    %v423 = vpop.permute.xlu0 %422
    %424 = vrot.lane.b32.xlu0 %v326, 127
    %v425 = vpop.permute.xlu0 %424
    %426 = vrot.lane.b32.xlu0 %v328, 127
    %v427 = vpop.permute.xlu0 %426
    %428 = vrot.lane.b32.xlu0 %v330, 127
    %v429 = vpop.permute.xlu0 %428
    %430 = vrot.lane.b32.xlu0 %v332, 127
    %v431 = vpop.permute.xlu0 %430
    %432 = vrot.lane.b32.xlu0 %v334, 127
    %v433 = vpop.permute.xlu0 %432
    %434 = vrot.lane.b32.xlu0 %v336, 127
    %v435 = vpop.permute.xlu0 %434
    %444 = vrot.lane.b32.xlu0 %v322, 125
    %v445 = vpop.permute.xlu0 %444
    %446 = vrot.lane.b32.xlu0 %v323, 125
    %v447 = vpop.permute.xlu0 %446
    %448 = vrot.lane.b32.xlu0 %v324, 125
    %v449 = vpop.permute.xlu0 %448
    %450 = vrot.lane.b32.xlu0 %v325, 125
    %v451 = vpop.permute.xlu0 %450
    %452 = vrot.lane.b32.xlu0 %v326, 125
    %v453 = vpop.permute.xlu0 %452
    %454 = vrot.lane.b32.xlu0 %v327, 125
    %v455 = vpop.permute.xlu0 %454
    %456 = vrot.lane.b32.xlu0 %v328, 125
    %v457 = vpop.permute.xlu0 %456
    %458 = vrot.lane.b32.xlu0 %v329, 125
    %v459 = vpop.permute.xlu0 %458
    %460 = vrot.lane.b32.xlu0 %v330, 125
    %v461 = vpop.permute.xlu0 %460
    %462 = vrot.lane.b32.xlu0 %v331, 125
    %v463 = vpop.permute.xlu0 %462
    %464 = vrot.lane.b32.xlu0 %v332, 125
    %v465 = vpop.permute.xlu0 %464
    %466 = vrot.lane.b32.xlu0 %v333, 125
    %v467 = vpop.permute.xlu0 %466
    %468 = vrot.lane.b32.xlu0 %v334, 125
    %v469 = vpop.permute.xlu0 %468
    %470 = vrot.lane.b32.xlu0 %v335, 125
    %v471 = vpop.permute.xlu0 %470
    %472 = vrot.lane.b32.xlu0 %v336, 125
    %v473 = vpop.permute.xlu0 %472
    %474 = vrot.lane.b32.xlu0 %v337, 125
    %v475 = vpop.permute.xlu0 %474
    %vm476 = vcmask 1022976
    %v477 = vsel %vm476, %v445, %v447
    %v478 = vsel %vm476, %v449, %v451
    %v479 = vsel %vm476, %v453, %v455
    %v480 = vsel %vm476, %v457, %v459
    %v481 = vsel %vm476, %v461, %v463
    %v482 = vsel %vm476, %v465, %v467
    %v483 = vsel %vm476, %v469, %v471
    %v484 = vsel %vm476, %v473, %v475
    %v501 = vsel %vm411, %v421, %v477
    %v502 = vsel %vm411, %v423, %v478
    %v503 = vsel %vm411, %v425, %v479
    %v504 = vsel %vm411, %v427, %v480
    %v505 = vsel %vm411, %v429, %v481
    %v506 = vsel %vm411, %v431, %v482
    %v507 = vsel %vm411, %v433, %v483
    %v508 = vsel %vm411, %v435, %v484
    %v509 = vmax.f32 %v412, %v501
    %v510 = vmax.f32 %v357, %v447
    %v511 = vmax.f32 %v413, %v502
    %v512 = vmax.f32 %v361, %v451
    %v513 = vmax.f32 %v414, %v503
    %v514 = vmax.f32 %v365, %v455
    %v515 = vmax.f32 %v415, %v504
    %v516 = vmax.f32 %v369, %v459
    %v517 = vmax.f32 %v416, %v505
    %v518 = vmax.f32 %v373, %v463
    %v519 = vmax.f32 %v417, %v506
    %v520 = vmax.f32 %v377, %v467
    %v521 = vmax.f32 %v418, %v507
    %v522 = vmax.f32 %v381, %v471
    %v523 = vmax.f32 %v419, %v508
    %v524 = vmax.f32 %v385, %v475
    %533 = vrot.lane.b32.xlu0 %v322, 124
    %v534 = vpop.permute.xlu0 %533
    %535 = vrot.lane.b32.xlu0 %v323, 124
    %v536 = vpop.permute.xlu0 %535
    %537 = vrot.lane.b32.xlu0 %v324, 124
    %v538 = vpop.permute.xlu0 %537
    %539 = vrot.lane.b32.xlu0 %v325, 124
    %v540 = vpop.permute.xlu0 %539
    %541 = vrot.lane.b32.xlu0 %v326, 124
    %v542 = vpop.permute.xlu0 %541
    %543 = vrot.lane.b32.xlu0 %v327, 124
    %v544 = vpop.permute.xlu0 %543
    %545 = vrot.lane.b32.xlu0 %v328, 124
    %v546 = vpop.permute.xlu0 %545
    %547 = vrot.lane.b32.xlu0 %v329, 124
    %v548 = vpop.permute.xlu0 %547
    %549 = vrot.lane.b32.xlu0 %v330, 124
    %v550 = vpop.permute.xlu0 %549
    %551 = vrot.lane.b32.xlu0 %v331, 124
    %v552 = vpop.permute.xlu0 %551
    %553 = vrot.lane.b32.xlu0 %v332, 124
    %v554 = vpop.permute.xlu0 %553
    %555 = vrot.lane.b32.xlu0 %v333, 124
    %v556 = vpop.permute.xlu0 %555
    %557 = vrot.lane.b32.xlu0 %v334, 124
    %v558 = vpop.permute.xlu0 %557
    %559 = vrot.lane.b32.xlu0 %v335, 124
    %v560 = vpop.permute.xlu0 %559
    %561 = vrot.lane.b32.xlu0 %v336, 124
    %v562 = vpop.permute.xlu0 %561
    %563 = vrot.lane.b32.xlu0 %v337, 124
    %v564 = vpop.permute.xlu0 %563
    %vm565 = vcmask 1014784
    %v566 = vsel %vm565, %v534, %v536
    %v567 = vsel %vm565, %v538, %v540
    %v568 = vsel %vm565, %v542, %v544
    %v569 = vsel %vm565, %v546, %v548
    %v570 = vsel %vm565, %v550, %v552
    %v571 = vsel %vm565, %v554, %v556
    %v572 = vsel %vm565, %v558, %v560
    %v573 = vsel %vm565, %v562, %v564
    %v590 = vsel %vm411, %v355, %v566
    %v591 = vsel %vm411, %v359, %v567
    %v592 = vsel %vm411, %v363, %v568
    %v593 = vsel %vm411, %v367, %v569
    %v594 = vsel %vm411, %v371, %v570
    %v595 = vsel %vm411, %v375, %v571
    %v596 = vsel %vm411, %v379, %v572
    %v597 = vsel %vm411, %v383, %v573
    %v598 = vmax.f32 %v509, %v590
    %v599 = vmax.f32 %v510, %v536
    %v600 = vmax.f32 %v511, %v591
    %v601 = vmax.f32 %v512, %v540
    %v602 = vmax.f32 %v513, %v592
    %v603 = vmax.f32 %v514, %v544
    %v604 = vmax.f32 %v515, %v593
    %v605 = vmax.f32 %v516, %v548
    %v606 = vmax.f32 %v517, %v594
    %v607 = vmax.f32 %v518, %v552
    %v608 = vmax.f32 %v519, %v595
    %v609 = vmax.f32 %v520, %v556
    %v610 = vmax.f32 %v521, %v596
    %v611 = vmax.f32 %v522, %v560
    %v612 = vmax.f32 %v523, %v597
    %v613 = vmax.f32 %v524, %v564
    %v614 = vpack.c.bf16 %v600, %v598
    %v615 = vpack.c.bf16 %v601, %v599
    %v616 = vpack.c.bf16 %v604, %v602
    %v617 = vpack.c.bf16 %v605, %v603
    %v618 = vpack.c.bf16 %v608, %v606
    %v619 = vpack.c.bf16 %v609, %v607
    %v620 = vpack.c.bf16 %v612, %v610
    %v621 = vpack.c.bf16 %v613, %v611
    %630 = vrot.lane.b32.xlu0 %v614, 124
    %v631 = vpop.permute.xlu0 %630
    %632 = vrot.lane.b32.xlu0 %v615, 124
    %v633 = vpop.permute.xlu0 %632
    %634 = vrot.lane.b32.xlu0 %v616, 124
    %v635 = vpop.permute.xlu0 %634
    %636 = vrot.lane.b32.xlu0 %v617, 124
    %v637 = vpop.permute.xlu0 %636
    %638 = vrot.lane.b32.xlu0 %v618, 124
    %v639 = vpop.permute.xlu0 %638
    %640 = vrot.lane.b32.xlu0 %v619, 124
    %v641 = vpop.permute.xlu0 %640
    %642 = vrot.lane.b32.xlu0 %v620, 124
    %v643 = vpop.permute.xlu0 %642
    %644 = vrot.lane.b32.xlu0 %v621, 124
    %v645 = vpop.permute.xlu0 %644
    %v646 = vsel %vm55, %v631, %v633
    %v647 = vsel %vm55, %v635, %v637
    %v648 = vsel %vm55, %v639, %v641
    %v649 = vsel %vm55, %v643, %v645
    %vm654 = vcmask 572416
    %v657 = vsel %vm654, %v614, %v646
    %v661 = vsel %vm654, %v616, %v647
    %v665 = vsel %vm654, %v618, %v648
    %v669 = vsel %vm654, %v620, %v649
    %671 = vrot.lane.b32.xlu0 %v614, 127
    %v672 = vpop.permute.xlu0 %671
    %673 = vrot.lane.b32.xlu0 %v616, 127
    %v674 = vpop.permute.xlu0 %673
    %675 = vrot.lane.b32.xlu0 %v618, 127
    %v676 = vpop.permute.xlu0 %675
    %677 = vrot.lane.b32.xlu0 %v620, 127
    %v678 = vpop.permute.xlu0 %677
    %679 = vrot.lane.b32.xlu0 %v614, 123
    %v680 = vpop.permute.xlu0 %679
    %681 = vrot.lane.b32.xlu0 %v615, 123
    %v682 = vpop.permute.xlu0 %681
    %683 = vrot.lane.b32.xlu0 %v616, 123
    %v684 = vpop.permute.xlu0 %683
    %685 = vrot.lane.b32.xlu0 %v617, 123
    %v686 = vpop.permute.xlu0 %685
    %687 = vrot.lane.b32.xlu0 %v618, 123
    %v688 = vpop.permute.xlu0 %687
    %689 = vrot.lane.b32.xlu0 %v619, 123
    %v690 = vpop.permute.xlu0 %689
    %691 = vrot.lane.b32.xlu0 %v620, 123
    %v692 = vpop.permute.xlu0 %691
    %693 = vrot.lane.b32.xlu0 %v621, 123
    %v694 = vpop.permute.xlu0 %693
    %v695 = vsel %vm69, %v680, %v682
    %v696 = vsel %vm69, %v684, %v686
    %v697 = vsel %vm69, %v688, %v690
    %v698 = vsel %vm69, %v692, %v694
    %v705 = vsel %vm654, %v672, %v695
    %v709 = vsel %vm654, %v674, %v696
    %v713 = vsel %vm654, %v676, %v697
    %v717 = vsel %vm654, %v678, %v698
    %719 = vrot.lane.b32.xlu0 %v614, 126
    %v720 = vpop.permute.xlu0 %719
    %721 = vrot.lane.b32.xlu0 %v616, 126
    %v722 = vpop.permute.xlu0 %721
    %723 = vrot.lane.b32.xlu0 %v618, 126
    %v724 = vpop.permute.xlu0 %723
    %725 = vrot.lane.b32.xlu0 %v620, 126
    %v726 = vpop.permute.xlu0 %725
    %727 = vrot.lane.b32.xlu0 %v614, 122
    %v728 = vpop.permute.xlu0 %727
    %729 = vrot.lane.b32.xlu0 %v615, 122
    %v730 = vpop.permute.xlu0 %729
    %731 = vrot.lane.b32.xlu0 %v616, 122
    %v732 = vpop.permute.xlu0 %731
    %733 = vrot.lane.b32.xlu0 %v617, 122
    %v734 = vpop.permute.xlu0 %733
    %735 = vrot.lane.b32.xlu0 %v618, 122
    %v736 = vpop.permute.xlu0 %735
    %737 = vrot.lane.b32.xlu0 %v619, 122
    %v738 = vpop.permute.xlu0 %737
    %739 = vrot.lane.b32.xlu0 %v620, 122
    %v740 = vpop.permute.xlu0 %739
    %741 = vrot.lane.b32.xlu0 %v621, 122
    %v742 = vpop.permute.xlu0 %741
    %v743 = vsel %vm80, %v728, %v730
    %v744 = vsel %vm80, %v732, %v734
    %v745 = vsel %vm80, %v736, %v738
    %v746 = vsel %vm80, %v740, %v742
    %v753 = vsel %vm654, %v720, %v743
    %v757 = vsel %vm654, %v722, %v744
    %v761 = vsel %vm654, %v724, %v745
    %v765 = vsel %vm654, %v726, %v746
    %767 = vrot.lane.b32.xlu0 %v614, 125
    %v768 = vpop.permute.xlu0 %767
    %769 = vrot.lane.b32.xlu0 %v616, 125
    %v770 = vpop.permute.xlu0 %769
    %771 = vrot.lane.b32.xlu0 %v618, 125
    %v772 = vpop.permute.xlu0 %771
    %773 = vrot.lane.b32.xlu0 %v620, 125
    %v774 = vpop.permute.xlu0 %773
    %775 = vrot.lane.b32.xlu0 %v614, 121
    %v776 = vpop.permute.xlu0 %775
    %777 = vrot.lane.b32.xlu0 %v615, 121
    %v778 = vpop.permute.xlu0 %777
    %779 = vrot.lane.b32.xlu0 %v616, 121
    %v780 = vpop.permute.xlu0 %779
    %781 = vrot.lane.b32.xlu0 %v617, 121
    %v782 = vpop.permute.xlu0 %781
    %783 = vrot.lane.b32.xlu0 %v618, 121
    %v784 = vpop.permute.xlu0 %783
    %785 = vrot.lane.b32.xlu0 %v619, 121
    %v786 = vpop.permute.xlu0 %785
    %787 = vrot.lane.b32.xlu0 %v620, 121
    %v788 = vpop.permute.xlu0 %787
    %789 = vrot.lane.b32.xlu0 %v621, 121
    %v790 = vpop.permute.xlu0 %789
    %v791 = vsel %vm91, %v776, %v778
    %v792 = vsel %vm91, %v780, %v782
    %v793 = vsel %vm91, %v784, %v786
    %v794 = vsel %vm91, %v788, %v790
    %v801 = vsel %vm654, %v768, %v791
    %v805 = vsel %vm654, %v770, %v792
    %v809 = vsel %vm654, %v772, %v793
    %v813 = vsel %vm654, %v774, %v794
    %815 = vrot.lane.b32.xlu0 %v614, 120
    %v816 = vpop.permute.xlu0 %815
    %817 = vrot.lane.b32.xlu0 %v615, 120
    %v818 = vpop.permute.xlu0 %817
    %819 = vrot.lane.b32.xlu0 %v616, 120
    %v820 = vpop.permute.xlu0 %819
    %821 = vrot.lane.b32.xlu0 %v617, 120
    %v822 = vpop.permute.xlu0 %821
    %823 = vrot.lane.b32.xlu0 %v618, 120
    %v824 = vpop.permute.xlu0 %823
    %825 = vrot.lane.b32.xlu0 %v619, 120
    %v826 = vpop.permute.xlu0 %825
    %827 = vrot.lane.b32.xlu0 %v620, 120
    %v828 = vpop.permute.xlu0 %827
    %829 = vrot.lane.b32.xlu0 %v621, 120
    %v830 = vpop.permute.xlu0 %829
    %v831 = vsel %vm100, %v816, %v818
    %v832 = vsel %vm100, %v820, %v822
    %v833 = vsel %vm100, %v824, %v826
    %v834 = vsel %vm100, %v828, %v830
    %v841 = vsel %vm654, %v631, %v831
    %v845 = vsel %vm654, %v635, %v832
    %v849 = vsel %vm654, %v639, %v833
    %v853 = vsel %vm654, %v643, %v834
    %v855 = vld [vmem:[%s3] sm:$0xff]
    %v856 = vld [vmem:[%s3 + $0x8] sm:$0xf]
    %v857 = vld [vmem:[%s3 + $0xc] sm:$0xff]
    %v858 = vld [vmem:[%s3 + $0x14] sm:$0xf]
    %v859 = vld [vmem:[%s3 + $0x18] sm:$0xff]
    %v860 = vld [vmem:[%s3 + $0x20] sm:$0xf]
    %v861 = vld [vmem:[%s3 + $0x24] sm:$0xff]
    %v862 = vld [vmem:[%s3 + $0x2c] sm:$0xf]
    %v863 = vld [vmem:[%s3 + $0x30] sm:$0xff]
    %v864 = vld [vmem:[%s3 + $0x38] sm:$0xf]
    %v865 = vld [vmem:[%s3 + $0x3c] sm:$0xff]
    %v866 = vld [vmem:[%s3 + $0x44] sm:$0xf]
    %v867 = vld [vmem:[%s3 + $0x48] sm:$0xff]
    %v868 = vld [vmem:[%s3 + $0x50] sm:$0xf]
    %v869 = vld [vmem:[%s3 + $0x54] sm:$0xff]
    %v870 = vld [vmem:[%s3 + $0x5c] sm:$0xf]
    %v871 = vld [vmem:[%s4] sm:$0xff]
    %v872 = vld [vmem:[%s4 + $0x8] sm:$0xff]
    %v873 = vld [vmem:[%s4 + $0x10] sm:$0xff]
    %v874 = vld [vmem:[%s4 + $0x18] sm:$0xff]
    %v875 = vld [vmem:[%s4 + $0x20] sm:$0xff]
    %v876 = vld [vmem:[%s4 + $0x28] sm:$0xff]
    %v877 = vld [vmem:[%s4 + $0x30] sm:$0xff]
    %v878 = vld [vmem:[%s4 + $0x38] sm:$0xff]
    %880 = vset.pattern.permute.xlu0 0
    %881 = vperm.xlu0 %880, %v871
    %v882 = vpop.permute.xlu0 %881
    %885 = vset.pattern.permute.xlu0 0
    %886 = vperm.xlu0 %885, %v872
    %v887 = vpop.permute.xlu0 %886
    %890 = vset.pattern.permute.xlu0 0
    %891 = vperm.xlu0 %890, %v873
    %v892 = vpop.permute.xlu0 %891
    %895 = vset.pattern.permute.xlu0 0
    %896 = vperm.xlu0 %895, %v874
    %v897 = vpop.permute.xlu0 %896
    %900 = vset.pattern.permute.xlu0 0
    %901 = vperm.xlu0 %900, %v875
    %v902 = vpop.permute.xlu0 %901
    %905 = vset.pattern.permute.xlu0 0
    %906 = vperm.xlu0 %905, %v876
    %v907 = vpop.permute.xlu0 %906
    %910 = vset.pattern.permute.xlu0 0
    %911 = vperm.xlu0 %910, %v877
    %v912 = vpop.permute.xlu0 %911
    %915 = vset.pattern.permute.xlu0 0
    %916 = vperm.xlu0 %915, %v878
    %v917 = vpop.permute.xlu0 %916
    %v935 = vunpack.c.l.b16 %v855
    %v936 = vunpack.c.h.b16 %v855
    %v937 = vunpack.c.l.b16 %v856
    %v938 = vunpack.c.l.b16 %v857
    %v939 = vunpack.c.h.b16 %v857
    %v940 = vunpack.c.l.b16 %v858
    %v941 = vunpack.c.l.b16 %v859
    %v942 = vunpack.c.h.b16 %v859
    %v943 = vunpack.c.l.b16 %v860
    %v944 = vunpack.c.l.b16 %v861
    %v945 = vunpack.c.h.b16 %v861
    %v946 = vunpack.c.l.b16 %v862
    %v947 = vunpack.c.l.b16 %v863
    %v948 = vunpack.c.h.b16 %v863
    %v949 = vunpack.c.l.b16 %v864
    %v950 = vunpack.c.l.b16 %v865
    %v951 = vunpack.c.h.b16 %v865
    %v952 = vunpack.c.l.b16 %v866
    %v953 = vunpack.c.l.b16 %v867
    %v954 = vunpack.c.h.b16 %v867
    %v955 = vunpack.c.l.b16 %v868
    %v956 = vunpack.c.l.b16 %v869
    %v957 = vunpack.c.h.b16 %v869
    %v958 = vunpack.c.l.b16 %v870
    %v959 = vpack.c.b16 %v938, %v935
    %v960 = vpack.c.b16 %v939, %v936
    %v961 = vpack.c.b16 %v940, %v937
    %v962 = vpack.c.b16 %v944, %v941
    %v963 = vpack.c.b16 %v945, %v942
    %v964 = vpack.c.b16 %v946, %v943
    %v965 = vpack.c.b16 %v950, %v947
    %v966 = vpack.c.b16 %v951, %v948
    %v967 = vpack.c.b16 %v952, %v949
    %v968 = vpack.c.b16 %v956, %v953
    %v969 = vpack.c.b16 %v957, %v954
    %v970 = vpack.c.b16 %v958, %v955
    %vm979 = vcmask 523264
    %v981 = vsel %vm979, %v961, 0
    %v984 = vsel %vm979, %v964, 0
    %v987 = vsel %vm979, %v967, 0
    %v990 = vsel %vm979, %v970, 0
    %992 = vmatprep.subr.bf16.mxu0 %v694
    %993 = vmatpush1.bf16.msra.mxu0 %v717
    %994 = vmatprep.subr.bf16.mxu0 %v690
    %995 = vmatpush1.bf16.msra.mxu0 %v713
    %996 = vmatprep.subr.bf16.mxu0 %v686
    %997 = vmatpush1.bf16.msra.mxu0 %v709
    %998 = vmatprep.subr.bf16.mxu0 %v682
    %999 = vmatpush1.bf16.msra.mxu0 %v705
    %1000 = vmatprep.subr.bf16.mxu0 %v645
    %1001 = vmatpush1.bf16.msra.mxu0 %v669
    %1002 = vmatprep.subr.bf16.mxu0 %v641
    %1003 = vmatpush1.bf16.msra.mxu0 %v665
    %1004 = vmatprep.subr.bf16.mxu0 %v637
    %1005 = vmatpush1.bf16.msra.mxu0 %v661
    %1006 = vmatprep.subr.bf16.mxu0 %v633
    %1007 = vmatpush1.bf16.msra.mxu0 %v657
    %1008 = vmatprep.subr.bf16.mxu0 %v790
    %1009 = vmatpush2.bf16.msra.mxu0 %v813
    %1010 = vmatprep.subr.bf16.mxu0 %v786
    %1011 = vmatpush2.bf16.msra.mxu0 %v809
    %1012 = vmatprep.subr.bf16.mxu0 %v782
    %1013 = vmatpush2.bf16.msra.mxu0 %v805
    %1014 = vmatprep.subr.bf16.mxu0 %v778
    %1015 = vmatpush2.bf16.msra.mxu0 %v801
    %1016 = vmatprep.subr.bf16.mxu0 %v742
    %1017 = vmatpush2.bf16.msra.mxu0 %v765
    %1018 = vmatprep.subr.bf16.mxu0 %v738
    %1019 = vmatpush2.bf16.msra.mxu0 %v761
    %1020 = vmatprep.subr.bf16.mxu0 %v734
    %1021 = vmatpush2.bf16.msra.mxu0 %v757
    %1022 = vmatprep.subr.bf16.mxu0 %v730
    %1023 = vmatpush2.bf16.msra.mxu0 %v753
    %1024 = vmatprep.mubr.bf16.mxu0 %v960
    %1025 = vmatmul.mubr.bf16.gmra.mxu0 %v959
    %v1026 = vpop.f32.mrf.mxu0
    %v1027 = vadd.f32 %v882, %v1026
    %v1028 = vpop.f32.mrf.mxu0
    %v1029 = vadd.f32 %v882, %v1028
    %v1030 = vpop.f32.mrf.mxu0
    %v1031 = vadd.f32 %v887, %v1030
    %v1032 = vpop.f32.mrf.mxu0
    %v1033 = vadd.f32 %v887, %v1032
    %1034 = vmatprep.mubr.bf16.mxu0 %v963
    %1035 = vmatmul.mubr.bf16.gmra.mxu0 %v962
    %v1036 = vpop.f32.mrf.mxu0
    %v1037 = vadd.f32 %v892, %v1036
    %v1038 = vpop.f32.mrf.mxu0
    %v1039 = vadd.f32 %v892, %v1038
    %v1040 = vpop.f32.mrf.mxu0
    %v1041 = vadd.f32 %v897, %v1040
    %v1042 = vpop.f32.mrf.mxu0
    %v1043 = vadd.f32 %v897, %v1042
    %1044 = vmatprep.mubr.bf16.mxu0 %v966
    %1045 = vmatmul.mubr.bf16.gmra.mxu0 %v965
    %v1046 = vpop.f32.mrf.mxu0
    %v1047 = vadd.f32 %v902, %v1046
    %v1048 = vpop.f32.mrf.mxu0
    %v1049 = vadd.f32 %v902, %v1048
    %v1050 = vpop.f32.mrf.mxu0
    %v1051 = vadd.f32 %v907, %v1050
    %v1052 = vpop.f32.mrf.mxu0
    %v1053 = vadd.f32 %v907, %v1052
    %1054 = vmatprep.mubr.bf16.mxu0 %v969
    %1055 = vmatmul.mubr.bf16.gmra.mxu0 %v968
    %v1056 = vpop.f32.mrf.mxu0
    %v1057 = vadd.f32 %v912, %v1056
    %v1058 = vpop.f32.mrf.mxu0
    %v1059 = vadd.f32 %v912, %v1058
    %v1060 = vpop.f32.mrf.mxu0
    %v1061 = vadd.f32 %v917, %v1060
    %v1062 = vpop.f32.mrf.mxu0
    %v1063 = vadd.f32 %v917, %v1062
    %1064 = vdwg.mxu0
    %1065 = vmatprep.subr.bf16.mxu0 0
    %1066 = vmatpush1.bf16.msra.mxu0 0
    %1067 = vmatprep.subr.bf16.mxu0 0
    %1068 = vmatpush1.bf16.msra.mxu0 0
    %1069 = vmatprep.subr.bf16.mxu0 0
    %1070 = vmatpush1.bf16.msra.mxu0 0
    %1071 = vmatprep.subr.bf16.mxu0 0
    %1072 = vmatpush1.bf16.msra.mxu0 0
    %1073 = vmatprep.subr.bf16.mxu0 %v830
    %1074 = vmatpush1.bf16.msra.mxu0 %v853
    %1075 = vmatprep.subr.bf16.mxu0 %v826
    %1076 = vmatpush1.bf16.msra.mxu0 %v849
    %1077 = vmatprep.subr.bf16.mxu0 %v822
    %1078 = vmatpush1.bf16.msra.mxu0 %v845
    %1079 = vmatprep.subr.bf16.mxu0 %v818
    %1080 = vmatpush1.bf16.msra.mxu0 %v841
    %1081 = vmatprep.subr.bf16.mxu0 0
    %1082 = vmatpush2.bf16.msra.mxu0 0
    %1083 = vmatprep.subr.bf16.mxu0 0
    %1084 = vmatpush2.bf16.msra.mxu0 0
    %1085 = vmatprep.subr.bf16.mxu0 0
    %1086 = vmatpush2.bf16.msra.mxu0 0
    %1087 = vmatprep.subr.bf16.mxu0 0
    %1088 = vmatpush2.bf16.msra.mxu0 0
    %1089 = vmatprep.subr.bf16.mxu0 0
    %1090 = vmatpush2.bf16.msra.mxu0 0
    %1091 = vmatprep.subr.bf16.mxu0 0
    %1092 = vmatpush2.bf16.msra.mxu0 0
    %1093 = vmatprep.subr.bf16.mxu0 0
    %1094 = vmatpush2.bf16.msra.mxu0 0
    %1095 = vmatprep.subr.bf16.mxu0 0
    %1096 = vmatpush2.bf16.msra.mxu0 0
    %1097 = vmatprep.mubr.bf16.mxu0 0
    %1098 = vmatmul.mubr.bf16.gmra.mxu0 %v981
    %v1099 = vpop.f32.mrf.mxu0
    %v1100 = vadd.f32 %v1027, %v1099
    %v1101 = vpop.f32.mrf.mxu0
    %v1102 = vadd.f32 %v1029, %v1101
    %v1103 = vpop.f32.mrf.mxu0
    %v1104 = vadd.f32 %v1031, %v1103
    %v1105 = vpop.f32.mrf.mxu0
    %v1106 = vadd.f32 %v1033, %v1105
    %1107 = vmatprep.mubr.bf16.mxu0 0
    %1108 = vmatmul.mubr.bf16.gmra.mxu0 %v984
    %v1109 = vpop.f32.mrf.mxu0
    %v1110 = vadd.f32 %v1037, %v1109
    %v1111 = vpop.f32.mrf.mxu0
    %v1112 = vadd.f32 %v1039, %v1111
    %v1113 = vpop.f32.mrf.mxu0
    %v1114 = vadd.f32 %v1041, %v1113
    %v1115 = vpop.f32.mrf.mxu0
    %v1116 = vadd.f32 %v1043, %v1115
    %1117 = vmatprep.mubr.bf16.mxu0 0
    %1118 = vmatmul.mubr.bf16.gmra.mxu0 %v987
    %v1119 = vpop.f32.mrf.mxu0
    %v1120 = vadd.f32 %v1047, %v1119
    %v1121 = vpop.f32.mrf.mxu0
    %v1122 = vadd.f32 %v1049, %v1121
    %v1123 = vpop.f32.mrf.mxu0
    %v1124 = vadd.f32 %v1051, %v1123
    %v1125 = vpop.f32.mrf.mxu0
    %v1126 = vadd.f32 %v1053, %v1125
    %1127 = vmatprep.mubr.bf16.mxu0 0
    %1128 = vmatmul.mubr.bf16.gmra.mxu0 %v990
    %v1129 = vpop.f32.mrf.mxu0
    %v1130 = vadd.f32 %v1057, %v1129
    %v1131 = vpop.f32.mrf.mxu0
    %v1132 = vadd.f32 %v1059, %v1131
    %v1133 = vpop.f32.mrf.mxu0
    %v1134 = vadd.f32 %v1061, %v1133
    %v1135 = vpop.f32.mrf.mxu0
    %v1136 = vadd.f32 %v1063, %v1135
    %1137 = vdwg.mxu0
    %v1138 = vmax.f32 %v1100, 0.0
    %v1139 = vmax.f32 %v1102, 0.0
    %v1140 = vmax.f32 %v1104, 0.0
    %v1141 = vmax.f32 %v1106, 0.0
    %v1142 = vmax.f32 %v1110, 0.0
    %v1143 = vmax.f32 %v1112, 0.0
    %v1144 = vmax.f32 %v1114, 0.0
    %v1145 = vmax.f32 %v1116, 0.0
    %v1146 = vmax.f32 %v1120, 0.0
    %v1147 = vmax.f32 %v1122, 0.0
    %v1148 = vmax.f32 %v1124, 0.0
    %v1149 = vmax.f32 %v1126, 0.0
    %v1150 = vmax.f32 %v1130, 0.0
    %v1151 = vmax.f32 %v1132, 0.0
    %v1152 = vmax.f32 %v1134, 0.0
    %v1153 = vmax.f32 %v1136, 0.0
    %1170 = vrot.lane.b32.xlu0 %v1138, 126
    %v1171 = vpop.permute.xlu0 %1170
    %1172 = vrot.lane.b32.xlu0 %v1139, 126
    %v1173 = vpop.permute.xlu0 %1172
    %1174 = vrot.lane.b32.xlu0 %v1140, 126
    %v1175 = vpop.permute.xlu0 %1174
    %1176 = vrot.lane.b32.xlu0 %v1141, 126
    %v1177 = vpop.permute.xlu0 %1176
    %1178 = vrot.lane.b32.xlu0 %v1142, 126
    %v1179 = vpop.permute.xlu0 %1178
    %1180 = vrot.lane.b32.xlu0 %v1143, 126
    %v1181 = vpop.permute.xlu0 %1180
    %1182 = vrot.lane.b32.xlu0 %v1144, 126
    %v1183 = vpop.permute.xlu0 %1182
    %1184 = vrot.lane.b32.xlu0 %v1145, 126
    %v1185 = vpop.permute.xlu0 %1184
    %1186 = vrot.lane.b32.xlu0 %v1146, 126
    %v1187 = vpop.permute.xlu0 %1186
    %1188 = vrot.lane.b32.xlu0 %v1147, 126
    %v1189 = vpop.permute.xlu0 %1188
    %1190 = vrot.lane.b32.xlu0 %v1148, 126
    %v1191 = vpop.permute.xlu0 %1190
    %1192 = vrot.lane.b32.xlu0 %v1149, 126
    %v1193 = vpop.permute.xlu0 %1192
    %1194 = vrot.lane.b32.xlu0 %v1150, 126
    %v1195 = vpop.permute.xlu0 %1194
    %1196 = vrot.lane.b32.xlu0 %v1151, 126
    %v1197 = vpop.permute.xlu0 %1196
    %1198 = vrot.lane.b32.xlu0 %v1152, 126
    %v1199 = vpop.permute.xlu0 %1198
    %1200 = vrot.lane.b32.xlu0 %v1153, 126
    %v1201 = vpop.permute.xlu0 %1200
    %v1202 = vsel %vm386, %v1171, %v1173
    %v1203 = vsel %vm386, %v1175, %v1177
    %v1204 = vsel %vm386, %v1179, %v1181
    %v1205 = vsel %vm386, %v1183, %v1185
    %v1206 = vsel %vm386, %v1187, %v1189
    %v1207 = vsel %vm386, %v1191, %v1193
    %v1208 = vsel %vm386, %v1195, %v1197
    %v1209 = vsel %vm386, %v1199, %v1201
    %vm1226 = vcmask 556032
    %v1227 = vsel %vm1226, %v1138, %v1202
    %v1228 = vsel %vm1226, %v1140, %v1203
    %v1229 = vsel %vm1226, %v1142, %v1204
    %v1230 = vsel %vm1226, %v1144, %v1205
    %v1231 = vsel %vm1226, %v1146, %v1206
    %v1232 = vsel %vm1226, %v1148, %v1207
    %v1233 = vsel %vm1226, %v1150, %v1208
    %v1234 = vsel %vm1226, %v1152, %v1209
    %1235 = vrot.lane.b32.xlu0 %v1138, 127
    %v1236 = vpop.permute.xlu0 %1235
    %1237 = vrot.lane.b32.xlu0 %v1140, 127
    %v1238 = vpop.permute.xlu0 %1237
    %1239 = vrot.lane.b32.xlu0 %v1142, 127
    %v1240 = vpop.permute.xlu0 %1239
    %1241 = vrot.lane.b32.xlu0 %v1144, 127
    %v1242 = vpop.permute.xlu0 %1241
    %1243 = vrot.lane.b32.xlu0 %v1146, 127
    %v1244 = vpop.permute.xlu0 %1243
    %1245 = vrot.lane.b32.xlu0 %v1148, 127
    %v1246 = vpop.permute.xlu0 %1245
    %1247 = vrot.lane.b32.xlu0 %v1150, 127
    %v1248 = vpop.permute.xlu0 %1247
    %1249 = vrot.lane.b32.xlu0 %v1152, 127
    %v1250 = vpop.permute.xlu0 %1249
    %1259 = vrot.lane.b32.xlu0 %v1138, 125
    %v1260 = vpop.permute.xlu0 %1259
    %1261 = vrot.lane.b32.xlu0 %v1139, 125
    %v1262 = vpop.permute.xlu0 %1261
    %1263 = vrot.lane.b32.xlu0 %v1140, 125
    %v1264 = vpop.permute.xlu0 %1263
    %1265 = vrot.lane.b32.xlu0 %v1141, 125
    %v1266 = vpop.permute.xlu0 %1265
    %1267 = vrot.lane.b32.xlu0 %v1142, 125
    %v1268 = vpop.permute.xlu0 %1267
    %1269 = vrot.lane.b32.xlu0 %v1143, 125
    %v1270 = vpop.permute.xlu0 %1269
    %1271 = vrot.lane.b32.xlu0 %v1144, 125
    %v1272 = vpop.permute.xlu0 %1271
    %1273 = vrot.lane.b32.xlu0 %v1145, 125
    %v1274 = vpop.permute.xlu0 %1273
    %1275 = vrot.lane.b32.xlu0 %v1146, 125
    %v1276 = vpop.permute.xlu0 %1275
    %1277 = vrot.lane.b32.xlu0 %v1147, 125
    %v1278 = vpop.permute.xlu0 %1277
    %1279 = vrot.lane.b32.xlu0 %v1148, 125
    %v1280 = vpop.permute.xlu0 %1279
    %1281 = vrot.lane.b32.xlu0 %v1149, 125
    %v1282 = vpop.permute.xlu0 %1281
    %1283 = vrot.lane.b32.xlu0 %v1150, 125
    %v1284 = vpop.permute.xlu0 %1283
    %1285 = vrot.lane.b32.xlu0 %v1151, 125
    %v1286 = vpop.permute.xlu0 %1285
    %1287 = vrot.lane.b32.xlu0 %v1152, 125
    %v1288 = vpop.permute.xlu0 %1287
    %1289 = vrot.lane.b32.xlu0 %v1153, 125
    %v1290 = vpop.permute.xlu0 %1289
    %v1291 = vsel %vm476, %v1260, %v1262
    %v1292 = vsel %vm476, %v1264, %v1266
    %v1293 = vsel %vm476, %v1268, %v1270
    %v1294 = vsel %vm476, %v1272, %v1274
    %v1295 = vsel %vm476, %v1276, %v1278
    %v1296 = vsel %vm476, %v1280, %v1282
    %v1297 = vsel %vm476, %v1284, %v1286
    %v1298 = vsel %vm476, %v1288, %v1290
    %v1315 = vsel %vm1226, %v1236, %v1291
    %v1316 = vsel %vm1226, %v1238, %v1292
    %v1317 = vsel %vm1226, %v1240, %v1293
    %v1318 = vsel %vm1226, %v1242, %v1294
    %v1319 = vsel %vm1226, %v1244, %v1295
    %v1320 = vsel %vm1226, %v1246, %v1296
    %v1321 = vsel %vm1226, %v1248, %v1297
    %v1322 = vsel %vm1226, %v1250, %v1298
    %v1323 = vmax.f32 %v1227, %v1315
    %v1324 = vmax.f32 %v1173, %v1262
    %v1325 = vmax.f32 %v1228, %v1316
    %v1326 = vmax.f32 %v1177, %v1266
    %v1327 = vmax.f32 %v1229, %v1317
    %v1328 = vmax.f32 %v1181, %v1270
    %v1329 = vmax.f32 %v1230, %v1318
    %v1330 = vmax.f32 %v1185, %v1274
    %v1331 = vmax.f32 %v1231, %v1319
    %v1332 = vmax.f32 %v1189, %v1278
    %v1333 = vmax.f32 %v1232, %v1320
    %v1334 = vmax.f32 %v1193, %v1282
    %v1335 = vmax.f32 %v1233, %v1321
    %v1336 = vmax.f32 %v1197, %v1286
    %v1337 = vmax.f32 %v1234, %v1322
    %v1338 = vmax.f32 %v1201, %v1290
    %1347 = vrot.lane.b32.xlu0 %v1138, 124
    %v1348 = vpop.permute.xlu0 %1347
    %1349 = vrot.lane.b32.xlu0 %v1139, 124
    %v1350 = vpop.permute.xlu0 %1349
    %1351 = vrot.lane.b32.xlu0 %v1140, 124
    %v1352 = vpop.permute.xlu0 %1351
    %1353 = vrot.lane.b32.xlu0 %v1141, 124
    %v1354 = vpop.permute.xlu0 %1353
    %1355 = vrot.lane.b32.xlu0 %v1142, 124
    %v1356 = vpop.permute.xlu0 %1355
    %1357 = vrot.lane.b32.xlu0 %v1143, 124
    %v1358 = vpop.permute.xlu0 %1357
    %1359 = vrot.lane.b32.xlu0 %v1144, 124
    %v1360 = vpop.permute.xlu0 %1359
    %1361 = vrot.lane.b32.xlu0 %v1145, 124
    %v1362 = vpop.permute.xlu0 %1361
    %1363 = vrot.lane.b32.xlu0 %v1146, 124
    %v1364 = vpop.permute.xlu0 %1363
    %1365 = vrot.lane.b32.xlu0 %v1147, 124
    %v1366 = vpop.permute.xlu0 %1365
    %1367 = vrot.lane.b32.xlu0 %v1148, 124
    %v1368 = vpop.permute.xlu0 %1367
    %1369 = vrot.lane.b32.xlu0 %v1149, 124
    %v1370 = vpop.permute.xlu0 %1369
    %1371 = vrot.lane.b32.xlu0 %v1150, 124
    %v1372 = vpop.permute.xlu0 %1371
    %1373 = vrot.lane.b32.xlu0 %v1151, 124
    %v1374 = vpop.permute.xlu0 %1373
    %1375 = vrot.lane.b32.xlu0 %v1152, 124
    %v1376 = vpop.permute.xlu0 %1375
    %1377 = vrot.lane.b32.xlu0 %v1153, 124
    %v1378 = vpop.permute.xlu0 %1377
    %v1379 = vsel %vm565, %v1348, %v1350
    %v1380 = vsel %vm565, %v1352, %v1354
    %v1381 = vsel %vm565, %v1356, %v1358
    %v1382 = vsel %vm565, %v1360, %v1362
    %v1383 = vsel %vm565, %v1364, %v1366
    %v1384 = vsel %vm565, %v1368, %v1370
    %v1385 = vsel %vm565, %v1372, %v1374
    %v1386 = vsel %vm565, %v1376, %v1378
    %v1403 = vsel %vm1226, %v1171, %v1379
    %v1404 = vsel %vm1226, %v1175, %v1380
    %v1405 = vsel %vm1226, %v1179, %v1381
    %v1406 = vsel %vm1226, %v1183, %v1382
    %v1407 = vsel %vm1226, %v1187, %v1383
    %v1408 = vsel %vm1226, %v1191, %v1384
    %v1409 = vsel %vm1226, %v1195, %v1385
    %v1410 = vsel %vm1226, %v1199, %v1386
    %v1411 = vmax.f32 %v1323, %v1403
    %v1412 = vmax.f32 %v1324, %v1350
    %v1413 = vmax.f32 %v1325, %v1404
    %v1414 = vmax.f32 %v1326, %v1354
    %v1415 = vmax.f32 %v1327, %v1405
    %v1416 = vmax.f32 %v1328, %v1358
    %v1417 = vmax.f32 %v1329, %v1406
    %v1418 = vmax.f32 %v1330, %v1362
    %v1419 = vmax.f32 %v1331, %v1407
    %v1420 = vmax.f32 %v1332, %v1366
    %v1421 = vmax.f32 %v1333, %v1408
    %v1422 = vmax.f32 %v1334, %v1370
    %v1423 = vmax.f32 %v1335, %v1409
    %v1424 = vmax.f32 %v1336, %v1374
    %v1425 = vmax.f32 %v1337, %v1410
    %v1426 = vmax.f32 %v1338, %v1378
    %v1427 = vpack.c.bf16 %v1413, %v1411
    %v1428 = vpack.c.bf16 %v1414, %v1412
    %v1429 = vpack.c.bf16 %v1417, %v1415
    %v1430 = vpack.c.bf16 %v1418, %v1416
    %v1431 = vpack.c.bf16 %v1421, %v1419
    %v1432 = vpack.c.bf16 %v1422, %v1420
    %v1433 = vpack.c.bf16 %v1425, %v1423
    %v1434 = vpack.c.bf16 %v1426, %v1424
    %1439 = vrot.lane.b32.xlu0 %v1427, 120
    %v1440 = vpop.permute.xlu0 %1439
    %1441 = vrot.lane.b32.xlu0 %v1429, 120
    %v1442 = vpop.permute.xlu0 %1441
    %1443 = vrot.lane.b32.xlu0 %v1431, 120
    %v1444 = vpop.permute.xlu0 %1443
    %1445 = vrot.lane.b32.xlu0 %v1433, 120
    %v1446 = vpop.permute.xlu0 %1445
    %vm1447 = vcmask 490496
    %v1450 = vsel %vm1447, %v1427, %v1440
    %v1454 = vsel %vm1447, %v1429, %v1442
    %v1458 = vsel %vm1447, %v1431, %v1444
    %v1462 = vsel %vm1447, %v1433, %v1446
    %1464 = vrot.lane.b32.xlu0 %v1427, 126
    %v1465 = vpop.permute.xlu0 %1464
    %1466 = vrot.lane.b32.xlu0 %v1429, 126
    %v1467 = vpop.permute.xlu0 %1466
    %1468 = vrot.lane.b32.xlu0 %v1431, 126
    %v1469 = vpop.permute.xlu0 %1468
    %1470 = vrot.lane.b32.xlu0 %v1433, 126
    %v1471 = vpop.permute.xlu0 %1470
    %1476 = vrot.lane.b32.xlu0 %v1427, 118
    %v1477 = vpop.permute.xlu0 %1476
    %1478 = vrot.lane.b32.xlu0 %v1428, 118
    %v1479 = vpop.permute.xlu0 %1478
    %1480 = vrot.lane.b32.xlu0 %v1429, 118
    %v1481 = vpop.permute.xlu0 %1480
    %1482 = vrot.lane.b32.xlu0 %v1430, 118
    %v1483 = vpop.permute.xlu0 %1482
    %1484 = vrot.lane.b32.xlu0 %v1431, 118
    %v1485 = vpop.permute.xlu0 %1484
    %1486 = vrot.lane.b32.xlu0 %v1432, 118
    %v1487 = vpop.permute.xlu0 %1486
    %1488 = vrot.lane.b32.xlu0 %v1433, 118
    %v1489 = vpop.permute.xlu0 %1488
    %1490 = vrot.lane.b32.xlu0 %v1434, 118
    %v1491 = vpop.permute.xlu0 %1490
    %vm1492 = vcmask 965632
    %v1493 = vsel %vm1492, %v1477, %v1479
    %v1494 = vsel %vm1492, %v1481, %v1483
    %v1495 = vsel %vm1492, %v1485, %v1487
    %v1496 = vsel %vm1492, %v1489, %v1491
    %v1499 = vsel %vm1447, %v1465, %v1493
    %v1503 = vsel %vm1447, %v1467, %v1494
    %v1507 = vsel %vm1447, %v1469, %v1495
    %v1511 = vsel %vm1447, %v1471, %v1496
    %1513 = vrot.lane.b32.xlu0 %v1427, 124
    %v1514 = vpop.permute.xlu0 %1513
    %1515 = vrot.lane.b32.xlu0 %v1429, 124
    %v1516 = vpop.permute.xlu0 %1515
    %1517 = vrot.lane.b32.xlu0 %v1431, 124
    %v1518 = vpop.permute.xlu0 %1517
    %1519 = vrot.lane.b32.xlu0 %v1433, 124
    %v1520 = vpop.permute.xlu0 %1519
    %1521 = vrot.lane.b32.xlu0 %v1427, 116
    %v1522 = vpop.permute.xlu0 %1521
    %1523 = vrot.lane.b32.xlu0 %v1428, 116
    %v1524 = vpop.permute.xlu0 %1523
    %1525 = vrot.lane.b32.xlu0 %v1429, 116
    %v1526 = vpop.permute.xlu0 %1525
    %1527 = vrot.lane.b32.xlu0 %v1430, 116
    %v1528 = vpop.permute.xlu0 %1527
    %1529 = vrot.lane.b32.xlu0 %v1431, 116
    %v1530 = vpop.permute.xlu0 %1529
    %1531 = vrot.lane.b32.xlu0 %v1432, 116
    %v1532 = vpop.permute.xlu0 %1531
    %1533 = vrot.lane.b32.xlu0 %v1433, 116
    %v1534 = vpop.permute.xlu0 %1533
    %1535 = vrot.lane.b32.xlu0 %v1434, 116
    %v1536 = vpop.permute.xlu0 %1535
    %vm1537 = vcmask 949248
    %v1538 = vsel %vm1537, %v1522, %v1524
    %v1539 = vsel %vm1537, %v1526, %v1528
    %v1540 = vsel %vm1537, %v1530, %v1532
    %v1541 = vsel %vm1537, %v1534, %v1536
    %v1544 = vsel %vm1447, %v1514, %v1538
    %v1548 = vsel %vm1447, %v1516, %v1539
    %v1552 = vsel %vm1447, %v1518, %v1540
    %v1556 = vsel %vm1447, %v1520, %v1541
    %1558 = vrot.lane.b32.xlu0 %v1427, 122
    %v1559 = vpop.permute.xlu0 %1558
    %1560 = vrot.lane.b32.xlu0 %v1429, 122
    %v1561 = vpop.permute.xlu0 %1560
    %1562 = vrot.lane.b32.xlu0 %v1431, 122
    %v1563 = vpop.permute.xlu0 %1562
    %1564 = vrot.lane.b32.xlu0 %v1433, 122
    %v1565 = vpop.permute.xlu0 %1564
    %1566 = vrot.lane.b32.xlu0 %v1427, 114
    %v1567 = vpop.permute.xlu0 %1566
    %1568 = vrot.lane.b32.xlu0 %v1428, 114
    %v1569 = vpop.permute.xlu0 %1568
    %1570 = vrot.lane.b32.xlu0 %v1429, 114
    %v1571 = vpop.permute.xlu0 %1570
    %1572 = vrot.lane.b32.xlu0 %v1430, 114
    %v1573 = vpop.permute.xlu0 %1572
    %1574 = vrot.lane.b32.xlu0 %v1431, 114
    %v1575 = vpop.permute.xlu0 %1574
    %1576 = vrot.lane.b32.xlu0 %v1432, 114
    %v1577 = vpop.permute.xlu0 %1576
    %1578 = vrot.lane.b32.xlu0 %v1433, 114
    %v1579 = vpop.permute.xlu0 %1578
    %1580 = vrot.lane.b32.xlu0 %v1434, 114
    %v1581 = vpop.permute.xlu0 %1580
    %vm1582 = vcmask 932864
    %v1583 = vsel %vm1582, %v1567, %v1569
    %v1584 = vsel %vm1582, %v1571, %v1573
    %v1585 = vsel %vm1582, %v1575, %v1577
    %v1586 = vsel %vm1582, %v1579, %v1581
    %v1589 = vsel %vm1447, %v1559, %v1583
    %v1593 = vsel %vm1447, %v1561, %v1584
    %v1597 = vsel %vm1447, %v1563, %v1585
    %v1601 = vsel %vm1447, %v1565, %v1586
    %1603 = vrot.lane.b32.xlu0 %v1427, 112
    %v1604 = vpop.permute.xlu0 %1603
    %1605 = vrot.lane.b32.xlu0 %v1428, 112
    %v1606 = vpop.permute.xlu0 %1605
    %1607 = vrot.lane.b32.xlu0 %v1429, 112
    %v1608 = vpop.permute.xlu0 %1607
    %1609 = vrot.lane.b32.xlu0 %v1430, 112
    %v1610 = vpop.permute.xlu0 %1609
    %1611 = vrot.lane.b32.xlu0 %v1431, 112
    %v1612 = vpop.permute.xlu0 %1611
    %1613 = vrot.lane.b32.xlu0 %v1432, 112
    %v1614 = vpop.permute.xlu0 %1613
    %1615 = vrot.lane.b32.xlu0 %v1433, 112
    %v1616 = vpop.permute.xlu0 %1615
    %1617 = vrot.lane.b32.xlu0 %v1434, 112
    %v1618 = vpop.permute.xlu0 %1617
    %vm1619 = vcmask 916480
    %v1620 = vsel %vm1619, %v1604, %v1606
    %v1621 = vsel %vm1619, %v1608, %v1610
    %v1622 = vsel %vm1619, %v1612, %v1614
    %v1623 = vsel %vm1619, %v1616, %v1618
    %v1625 = vsel %vm1447, %v1440, %v1620
    %v1628 = vsel %vm1447, %v1442, %v1621
    %v1631 = vsel %vm1447, %v1444, %v1622
    %v1634 = vsel %vm1447, %v1446, %v1623
    %v1636 = vld [vmem:[%s5] sm:$0xff]
    %v1637 = vld [vmem:[%s5 + $0x8] sm:$0xf]
    %v1638 = vld [vmem:[%s5 + $0xc] sm:$0xff]
    %v1639 = vld [vmem:[%s5 + $0x14] sm:$0xf]
    %v1640 = vld [vmem:[%s5 + $0x18] sm:$0xff]
    %v1641 = vld [vmem:[%s5 + $0x20] sm:$0xf]
    %v1642 = vld [vmem:[%s5 + $0x24] sm:$0xff]
    %v1643 = vld [vmem:[%s5 + $0x2c] sm:$0xf]
    %v1644 = vld [vmem:[%s5 + $0x30] sm:$0xff]
    %v1645 = vld [vmem:[%s5 + $0x38] sm:$0xf]
    %v1646 = vld [vmem:[%s5 + $0x3c] sm:$0xff]
    %v1647 = vld [vmem:[%s5 + $0x44] sm:$0xf]
    %v1648 = vld [vmem:[%s5 + $0x48] sm:$0xff]
    %v1649 = vld [vmem:[%s5 + $0x50] sm:$0xf]
    %v1650 = vld [vmem:[%s5 + $0x54] sm:$0xff]
    %v1651 = vld [vmem:[%s5 + $0x5c] sm:$0xf]
    %v1652 = vld [vmem:[%s6] sm:$0xff]
    %v1653 = vld [vmem:[%s6 + $0x8] sm:$0xff]
    %v1654 = vld [vmem:[%s6 + $0x10] sm:$0xff]
    %v1655 = vld [vmem:[%s6 + $0x18] sm:$0xff]
    %v1656 = vld [vmem:[%s6 + $0x20] sm:$0xff]
    %v1657 = vld [vmem:[%s6 + $0x28] sm:$0xff]
    %v1658 = vld [vmem:[%s6 + $0x30] sm:$0xff]
    %v1659 = vld [vmem:[%s6 + $0x38] sm:$0xff]
    %1661 = vset.pattern.permute.xlu0 0
    %1662 = vperm.xlu0 %1661, %v1652
    %v1663 = vpop.permute.xlu0 %1662
    %1666 = vset.pattern.permute.xlu0 0
    %1667 = vperm.xlu0 %1666, %v1653
    %v1668 = vpop.permute.xlu0 %1667
    %1671 = vset.pattern.permute.xlu0 0
    %1672 = vperm.xlu0 %1671, %v1654
    %v1673 = vpop.permute.xlu0 %1672
    %1676 = vset.pattern.permute.xlu0 0
    %1677 = vperm.xlu0 %1676, %v1655
    %v1678 = vpop.permute.xlu0 %1677
    %1681 = vset.pattern.permute.xlu0 0
    %1682 = vperm.xlu0 %1681, %v1656
    %v1683 = vpop.permute.xlu0 %1682
    %1686 = vset.pattern.permute.xlu0 0
    %1687 = vperm.xlu0 %1686, %v1657
    %v1688 = vpop.permute.xlu0 %1687
    %1691 = vset.pattern.permute.xlu0 0
    %1692 = vperm.xlu0 %1691, %v1658
    %v1693 = vpop.permute.xlu0 %1692
    %1696 = vset.pattern.permute.xlu0 0
    %1697 = vperm.xlu0 %1696, %v1659
    %v1698 = vpop.permute.xlu0 %1697
    %v1716 = vunpack.c.l.b16 %v1636
    %v1717 = vunpack.c.h.b16 %v1636
    %v1718 = vunpack.c.l.b16 %v1637
    %v1719 = vunpack.c.l.b16 %v1638
    %v1720 = vunpack.c.h.b16 %v1638
    %v1721 = vunpack.c.l.b16 %v1639
    %v1722 = vunpack.c.l.b16 %v1640
    %v1723 = vunpack.c.h.b16 %v1640
    %v1724 = vunpack.c.l.b16 %v1641
    %v1725 = vunpack.c.l.b16 %v1642
    %v1726 = vunpack.c.h.b16 %v1642
    %v1727 = vunpack.c.l.b16 %v1643
    %v1728 = vunpack.c.l.b16 %v1644
    %v1729 = vunpack.c.h.b16 %v1644
    %v1730 = vunpack.c.l.b16 %v1645
    %v1731 = vunpack.c.l.b16 %v1646
    %v1732 = vunpack.c.h.b16 %v1646
    %v1733 = vunpack.c.l.b16 %v1647
    %v1734 = vunpack.c.l.b16 %v1648
    %v1735 = vunpack.c.h.b16 %v1648
    %v1736 = vunpack.c.l.b16 %v1649
    %v1737 = vunpack.c.l.b16 %v1650
    %v1738 = vunpack.c.h.b16 %v1650
    %v1739 = vunpack.c.l.b16 %v1651
    %v1740 = vpack.c.b16 %v1719, %v1716
    %v1741 = vpack.c.b16 %v1720, %v1717
    %v1742 = vpack.c.b16 %v1721, %v1718
    %v1743 = vpack.c.b16 %v1725, %v1722
    %v1744 = vpack.c.b16 %v1726, %v1723
    %v1745 = vpack.c.b16 %v1727, %v1724
    %v1746 = vpack.c.b16 %v1731, %v1728
    %v1747 = vpack.c.b16 %v1732, %v1729
    %v1748 = vpack.c.b16 %v1733, %v1730
    %v1749 = vpack.c.b16 %v1737, %v1734
    %v1750 = vpack.c.b16 %v1738, %v1735
    %v1751 = vpack.c.b16 %v1739, %v1736
    %v1761 = vsel %vm979, %v1742, 0
    %v1764 = vsel %vm979, %v1745, 0
    %v1767 = vsel %vm979, %v1748, 0
    %v1770 = vsel %vm979, %v1751, 0
    %1772 = vmatprep.subr.bf16.mxu0 0
    %1773 = vmatpush1.bf16.msra.mxu0 %v1511
    %1774 = vmatprep.subr.bf16.mxu0 0
    %1775 = vmatpush1.bf16.msra.mxu0 %v1507
    %1776 = vmatprep.subr.bf16.mxu0 0
    %1777 = vmatpush1.bf16.msra.mxu0 %v1503
    %1778 = vmatprep.subr.bf16.mxu0 0
    %1779 = vmatpush1.bf16.msra.mxu0 %v1499
    %1780 = vmatprep.subr.bf16.mxu0 0
    %1781 = vmatpush1.bf16.msra.mxu0 %v1462
    %1782 = vmatprep.subr.bf16.mxu0 0
    %1783 = vmatpush1.bf16.msra.mxu0 %v1458
    %1784 = vmatprep.subr.bf16.mxu0 0
    %1785 = vmatpush1.bf16.msra.mxu0 %v1454
    %1786 = vmatprep.subr.bf16.mxu0 0
    %1787 = vmatpush1.bf16.msra.mxu0 %v1450
    %1788 = vmatprep.subr.bf16.mxu0 0
    %1789 = vmatpush2.bf16.msra.mxu0 %v1601
    %1790 = vmatprep.subr.bf16.mxu0 0
    %1791 = vmatpush2.bf16.msra.mxu0 %v1597
    %1792 = vmatprep.subr.bf16.mxu0 0
    %1793 = vmatpush2.bf16.msra.mxu0 %v1593
    %1794 = vmatprep.subr.bf16.mxu0 0
    %1795 = vmatpush2.bf16.msra.mxu0 %v1589
    %1796 = vmatprep.subr.bf16.mxu0 0
    %1797 = vmatpush2.bf16.msra.mxu0 %v1556
    %1798 = vmatprep.subr.bf16.mxu0 0
    %1799 = vmatpush2.bf16.msra.mxu0 %v1552
    %1800 = vmatprep.subr.bf16.mxu0 0
    %1801 = vmatpush2.bf16.msra.mxu0 %v1548
    %1802 = vmatprep.subr.bf16.mxu0 0
    %1803 = vmatpush2.bf16.msra.mxu0 %v1544
    %1804 = vmatprep.mubr.bf16.mxu0 %v1741
    %1805 = vmatmul.mubr.bf16.gmra.mxu0 %v1740
    %v1806 = vpop.f32.mrf.mxu0
    %v1807 = vadd.f32 %v1663, %v1806
    %v1808 = vpop.f32.mrf.mxu0
    %v1809 = vpop.f32.mrf.mxu0
    %v1810 = vadd.f32 %v1668, %v1809
    %v1811 = vpop.f32.mrf.mxu0
    %1812 = vmatprep.mubr.bf16.mxu0 %v1744
    %1813 = vmatmul.mubr.bf16.gmra.mxu0 %v1743
    %v1814 = vpop.f32.mrf.mxu0
    %v1815 = vadd.f32 %v1673, %v1814
    %v1816 = vpop.f32.mrf.mxu0
    %v1817 = vpop.f32.mrf.mxu0
    %v1818 = vadd.f32 %v1678, %v1817
    %v1819 = vpop.f32.mrf.mxu0
    %1820 = vmatprep.mubr.bf16.mxu0 %v1747
    %1821 = vmatmul.mubr.bf16.gmra.mxu0 %v1746
    %v1822 = vpop.f32.mrf.mxu0
    %v1823 = vadd.f32 %v1683, %v1822
    %v1824 = vpop.f32.mrf.mxu0
    %v1825 = vpop.f32.mrf.mxu0
    %v1826 = vadd.f32 %v1688, %v1825
    %v1827 = vpop.f32.mrf.mxu0
    %1828 = vmatprep.mubr.bf16.mxu0 %v1750
    %1829 = vmatmul.mubr.bf16.gmra.mxu0 %v1749
    %v1830 = vpop.f32.mrf.mxu0
    %v1831 = vadd.f32 %v1693, %v1830
    %v1832 = vpop.f32.mrf.mxu0
    %v1833 = vpop.f32.mrf.mxu0
    %v1834 = vadd.f32 %v1698, %v1833
    %v1835 = vpop.f32.mrf.mxu0
    %1836 = vdwg.mxu0
    %1837 = vmatprep.subr.bf16.mxu0 0
    %1838 = vmatpush1.bf16.msra.mxu0 0
    %1839 = vmatprep.subr.bf16.mxu0 0
    %1840 = vmatpush1.bf16.msra.mxu0 0
    %1841 = vmatprep.subr.bf16.mxu0 0
    %1842 = vmatpush1.bf16.msra.mxu0 0
    %1843 = vmatprep.subr.bf16.mxu0 0
    %1844 = vmatpush1.bf16.msra.mxu0 0
    %1845 = vmatprep.subr.bf16.mxu0 0
    %1846 = vmatpush1.bf16.msra.mxu0 %v1634
    %1847 = vmatprep.subr.bf16.mxu0 0
    %1848 = vmatpush1.bf16.msra.mxu0 %v1631
    %1849 = vmatprep.subr.bf16.mxu0 0
    %1850 = vmatpush1.bf16.msra.mxu0 %v1628
    %1851 = vmatprep.subr.bf16.mxu0 0
    %1852 = vmatpush1.bf16.msra.mxu0 %v1625
    %1853 = vmatprep.subr.bf16.mxu0 0
    %1854 = vmatpush2.bf16.msra.mxu0 0
    %1855 = vmatprep.subr.bf16.mxu0 0
    %1856 = vmatpush2.bf16.msra.mxu0 0
    %1857 = vmatprep.subr.bf16.mxu0 0
    %1858 = vmatpush2.bf16.msra.mxu0 0
    %1859 = vmatprep.subr.bf16.mxu0 0
    %1860 = vmatpush2.bf16.msra.mxu0 0
    %1861 = vmatprep.subr.bf16.mxu0 0
    %1862 = vmatpush2.bf16.msra.mxu0 0
    %1863 = vmatprep.subr.bf16.mxu0 0
    %1864 = vmatpush2.bf16.msra.mxu0 0
    %1865 = vmatprep.subr.bf16.mxu0 0
    %1866 = vmatpush2.bf16.msra.mxu0 0
    %1867 = vmatprep.subr.bf16.mxu0 0
    %1868 = vmatpush2.bf16.msra.mxu0 0
    %1869 = vmatprep.mubr.bf16.mxu0 0
    %1870 = vmatmul.mubr.bf16.gmra.mxu0 %v1761
    %v1871 = vpop.f32.mrf.mxu0
    %v1872 = vadd.f32 %v1807, %v1871
    %v1873 = vpop.f32.mrf.mxu0
    %v1874 = vpop.f32.mrf.mxu0
    %v1875 = vadd.f32 %v1810, %v1874
    %v1876 = vpop.f32.mrf.mxu0
    %1877 = vmatprep.mubr.bf16.mxu0 0
    %1878 = vmatmul.mubr.bf16.gmra.mxu0 %v1764
    %v1879 = vpop.f32.mrf.mxu0
    %v1880 = vadd.f32 %v1815, %v1879
    %v1881 = vpop.f32.mrf.mxu0
    %v1882 = vpop.f32.mrf.mxu0
    %v1883 = vadd.f32 %v1818, %v1882
    %v1884 = vpop.f32.mrf.mxu0
    %1885 = vmatprep.mubr.bf16.mxu0 0
    %1886 = vmatmul.mubr.bf16.gmra.mxu0 %v1767
    %v1887 = vpop.f32.mrf.mxu0
    %v1888 = vadd.f32 %v1823, %v1887
    %v1889 = vpop.f32.mrf.mxu0
    %v1890 = vpop.f32.mrf.mxu0
    %v1891 = vadd.f32 %v1826, %v1890
    %v1892 = vpop.f32.mrf.mxu0
    %1893 = vmatprep.mubr.bf16.mxu0 0
    %1894 = vmatmul.mubr.bf16.gmra.mxu0 %v1770
    %v1895 = vpop.f32.mrf.mxu0
    %v1896 = vadd.f32 %v1831, %v1895
    %v1897 = vpop.f32.mrf.mxu0
    %v1898 = vpop.f32.mrf.mxu0
    %v1899 = vadd.f32 %v1834, %v1898
    %v1900 = vpop.f32.mrf.mxu0
    %1901 = vdwg.mxu0
    %v1902 = vmax.f32 %v1872, 0.0
    %v1903 = vmax.f32 %v1875, 0.0
    %v1904 = vmax.f32 %v1880, 0.0
    %v1905 = vmax.f32 %v1883, 0.0
    %v1906 = vmax.f32 %v1888, 0.0
    %v1907 = vmax.f32 %v1891, 0.0
    %v1908 = vmax.f32 %v1896, 0.0
    %v1909 = vmax.f32 %v1899, 0.0
    %1918 = vrot.lane.b32.xlu0 %v1902, 126
    %v1919 = vpop.permute.xlu0 %1918
    %1920 = vrot.lane.b32.xlu0 %v1903, 126
    %v1921 = vpop.permute.xlu0 %1920
    %1922 = vrot.lane.b32.xlu0 %v1904, 126
    %v1923 = vpop.permute.xlu0 %1922
    %1924 = vrot.lane.b32.xlu0 %v1905, 126
    %v1925 = vpop.permute.xlu0 %1924
    %1926 = vrot.lane.b32.xlu0 %v1906, 126
    %v1927 = vpop.permute.xlu0 %1926
    %1928 = vrot.lane.b32.xlu0 %v1907, 126
    %v1929 = vpop.permute.xlu0 %1928
    %1930 = vrot.lane.b32.xlu0 %v1908, 126
    %v1931 = vpop.permute.xlu0 %1930
    %1932 = vrot.lane.b32.xlu0 %v1909, 126
    %v1933 = vpop.permute.xlu0 %1932
    %vm1942 = vcmask 474112
    %v1943 = vsel %vm1942, %v1902, %v1919
    %v1944 = vsel %vm1942, %v1903, %v1921
    %v1945 = vsel %vm1942, %v1904, %v1923
    %v1946 = vsel %vm1942, %v1905, %v1925
    %v1947 = vsel %vm1942, %v1906, %v1927
    %v1948 = vsel %vm1942, %v1907, %v1929
    %v1949 = vsel %vm1942, %v1908, %v1931
    %v1950 = vsel %vm1942, %v1909, %v1933
    %1951 = vrot.lane.b32.xlu0 %v1902, 127
    %v1952 = vpop.permute.xlu0 %1951
    %1953 = vrot.lane.b32.xlu0 %v1903, 127
    %v1954 = vpop.permute.xlu0 %1953
    %1955 = vrot.lane.b32.xlu0 %v1904, 127
    %v1956 = vpop.permute.xlu0 %1955
    %1957 = vrot.lane.b32.xlu0 %v1905, 127
    %v1958 = vpop.permute.xlu0 %1957
    %1959 = vrot.lane.b32.xlu0 %v1906, 127
    %v1960 = vpop.permute.xlu0 %1959
    %1961 = vrot.lane.b32.xlu0 %v1907, 127
    %v1962 = vpop.permute.xlu0 %1961
    %1963 = vrot.lane.b32.xlu0 %v1908, 127
    %v1964 = vpop.permute.xlu0 %1963
    %1965 = vrot.lane.b32.xlu0 %v1909, 127
    %v1966 = vpop.permute.xlu0 %1965
    %1975 = vrot.lane.b32.xlu0 %v1902, 125
    %v1976 = vpop.permute.xlu0 %1975
    %1977 = vrot.lane.b32.xlu0 %v1903, 125
    %v1978 = vpop.permute.xlu0 %1977
    %1979 = vrot.lane.b32.xlu0 %v1904, 125
    %v1980 = vpop.permute.xlu0 %1979
    %1981 = vrot.lane.b32.xlu0 %v1905, 125
    %v1982 = vpop.permute.xlu0 %1981
    %1983 = vrot.lane.b32.xlu0 %v1906, 125
    %v1984 = vpop.permute.xlu0 %1983
    %1985 = vrot.lane.b32.xlu0 %v1907, 125
    %v1986 = vpop.permute.xlu0 %1985
    %1987 = vrot.lane.b32.xlu0 %v1908, 125
    %v1988 = vpop.permute.xlu0 %1987
    %1989 = vrot.lane.b32.xlu0 %v1909, 125
    %v1990 = vpop.permute.xlu0 %1989
    %v1999 = vsel %vm1942, %v1952, %v1976
    %v2000 = vsel %vm1942, %v1954, %v1978
    %v2001 = vsel %vm1942, %v1956, %v1980
    %v2002 = vsel %vm1942, %v1958, %v1982
    %v2003 = vsel %vm1942, %v1960, %v1984
    %v2004 = vsel %vm1942, %v1962, %v1986
    %v2005 = vsel %vm1942, %v1964, %v1988
    %v2006 = vsel %vm1942, %v1966, %v1990
    %v2007 = vmax.f32 %v1943, %v1999
    %v2008 = vmax.f32 %v1944, %v2000
    %v2009 = vmax.f32 %v1945, %v2001
    %v2010 = vmax.f32 %v1946, %v2002
    %v2011 = vmax.f32 %v1947, %v2003
    %v2012 = vmax.f32 %v1948, %v2004
    %v2013 = vmax.f32 %v1949, %v2005
    %v2014 = vmax.f32 %v1950, %v2006
    %2015 = vrot.lane.b32.xlu0 %v1902, 124
    %v2016 = vpop.permute.xlu0 %2015
    %2017 = vrot.lane.b32.xlu0 %v1903, 124
    %v2018 = vpop.permute.xlu0 %2017
    %2019 = vrot.lane.b32.xlu0 %v1904, 124
    %v2020 = vpop.permute.xlu0 %2019
    %2021 = vrot.lane.b32.xlu0 %v1905, 124
    %v2022 = vpop.permute.xlu0 %2021
    %2023 = vrot.lane.b32.xlu0 %v1906, 124
    %v2024 = vpop.permute.xlu0 %2023
    %2025 = vrot.lane.b32.xlu0 %v1907, 124
    %v2026 = vpop.permute.xlu0 %2025
    %2027 = vrot.lane.b32.xlu0 %v1908, 124
    %v2028 = vpop.permute.xlu0 %2027
    %2029 = vrot.lane.b32.xlu0 %v1909, 124
    %v2030 = vpop.permute.xlu0 %2029
    %v2039 = vsel %vm1942, %v1919, %v2016
    %v2040 = vsel %vm1942, %v1921, %v2018
    %v2041 = vsel %vm1942, %v1923, %v2020
    %v2042 = vsel %vm1942, %v1925, %v2022
    %v2043 = vsel %vm1942, %v1927, %v2024
    %v2044 = vsel %vm1942, %v1929, %v2026
    %v2045 = vsel %vm1942, %v1931, %v2028
    %v2046 = vsel %vm1942, %v1933, %v2030
    %v2047 = vmax.f32 %v2007, %v2039
    %v2048 = vmax.f32 %v2008, %v2040
    %v2049 = vmax.f32 %v2009, %v2041
    %v2050 = vmax.f32 %v2010, %v2042
    %v2051 = vmax.f32 %v2011, %v2043
    %v2052 = vmax.f32 %v2012, %v2044
    %v2053 = vmax.f32 %v2013, %v2045
    %v2054 = vmax.f32 %v2014, %v2046
    %v2055 = vpack.c.bf16 %v2048, %v2047
    %v2056 = vpack.c.bf16 %v2050, %v2049
    %v2057 = vpack.c.bf16 %v2052, %v2051
    %v2058 = vpack.c.bf16 %v2054, %v2053
    %2063 = vrot.lane.b32.xlu0 %v2055, 120
    %v2064 = vpop.permute.xlu0 %2063
    %2065 = vrot.lane.b32.xlu0 %v2056, 120
    %v2066 = vpop.permute.xlu0 %2065
    %2067 = vrot.lane.b32.xlu0 %v2057, 120
    %v2068 = vpop.permute.xlu0 %2067
    %2069 = vrot.lane.b32.xlu0 %v2058, 120
    %v2070 = vpop.permute.xlu0 %2069
    %vm2071 = vcmask 408576
    %v2074 = vsel %vm2071, %v2055, %v2064
    %v2078 = vsel %vm2071, %v2056, %v2066
    %v2082 = vsel %vm2071, %v2057, %v2068
    %v2086 = vsel %vm2071, %v2058, %v2070
    %2088 = vrot.lane.b32.xlu0 %v2055, 126
    %v2089 = vpop.permute.xlu0 %2088
    %2090 = vrot.lane.b32.xlu0 %v2056, 126
    %v2091 = vpop.permute.xlu0 %2090
    %2092 = vrot.lane.b32.xlu0 %v2057, 126
    %v2093 = vpop.permute.xlu0 %2092
    %2094 = vrot.lane.b32.xlu0 %v2058, 126
    %v2095 = vpop.permute.xlu0 %2094
    %2096 = vrot.lane.b32.xlu0 %v2055, 118
    %v2097 = vpop.permute.xlu0 %2096
    %2098 = vrot.lane.b32.xlu0 %v2056, 118
    %v2099 = vpop.permute.xlu0 %2098
    %2100 = vrot.lane.b32.xlu0 %v2057, 118
    %v2101 = vpop.permute.xlu0 %2100
    %2102 = vrot.lane.b32.xlu0 %v2058, 118
    %v2103 = vpop.permute.xlu0 %2102
    %v2106 = vsel %vm2071, %v2089, %v2097
    %v2110 = vsel %vm2071, %v2091, %v2099
    %v2114 = vsel %vm2071, %v2093, %v2101
    %v2118 = vsel %vm2071, %v2095, %v2103
    %2120 = vrot.lane.b32.xlu0 %v2055, 124
    %v2121 = vpop.permute.xlu0 %2120
    %2122 = vrot.lane.b32.xlu0 %v2056, 124
    %v2123 = vpop.permute.xlu0 %2122
    %2124 = vrot.lane.b32.xlu0 %v2057, 124
    %v2125 = vpop.permute.xlu0 %2124
    %2126 = vrot.lane.b32.xlu0 %v2058, 124
    %v2127 = vpop.permute.xlu0 %2126
    %2128 = vrot.lane.b32.xlu0 %v2055, 116
    %v2129 = vpop.permute.xlu0 %2128
    %2130 = vrot.lane.b32.xlu0 %v2056, 116
    %v2131 = vpop.permute.xlu0 %2130
    %2132 = vrot.lane.b32.xlu0 %v2057, 116
    %v2133 = vpop.permute.xlu0 %2132
    %2134 = vrot.lane.b32.xlu0 %v2058, 116
    %v2135 = vpop.permute.xlu0 %2134
    %v2138 = vsel %vm2071, %v2121, %v2129
    %v2142 = vsel %vm2071, %v2123, %v2131
    %v2146 = vsel %vm2071, %v2125, %v2133
    %v2150 = vsel %vm2071, %v2127, %v2135
    %2152 = vrot.lane.b32.xlu0 %v2055, 122
    %v2153 = vpop.permute.xlu0 %2152
    %2154 = vrot.lane.b32.xlu0 %v2056, 122
    %v2155 = vpop.permute.xlu0 %2154
    %2156 = vrot.lane.b32.xlu0 %v2057, 122
    %v2157 = vpop.permute.xlu0 %2156
    %2158 = vrot.lane.b32.xlu0 %v2058, 122
    %v2159 = vpop.permute.xlu0 %2158
    %2160 = vrot.lane.b32.xlu0 %v2055, 114
    %v2161 = vpop.permute.xlu0 %2160
    %2162 = vrot.lane.b32.xlu0 %v2056, 114
    %v2163 = vpop.permute.xlu0 %2162
    %2164 = vrot.lane.b32.xlu0 %v2057, 114
    %v2165 = vpop.permute.xlu0 %2164
    %2166 = vrot.lane.b32.xlu0 %v2058, 114
    %v2167 = vpop.permute.xlu0 %2166
    %v2170 = vsel %vm2071, %v2153, %v2161
    %v2174 = vsel %vm2071, %v2155, %v2163
    %v2178 = vsel %vm2071, %v2157, %v2165
    %v2182 = vsel %vm2071, %v2159, %v2167
    %2184 = vrot.lane.b32.xlu0 %v2055, 112
    %v2185 = vpop.permute.xlu0 %2184
    %2186 = vrot.lane.b32.xlu0 %v2056, 112
    %v2187 = vpop.permute.xlu0 %2186
    %2188 = vrot.lane.b32.xlu0 %v2057, 112
    %v2189 = vpop.permute.xlu0 %2188
    %2190 = vrot.lane.b32.xlu0 %v2058, 112
    %v2191 = vpop.permute.xlu0 %2190
    %v2193 = vsel %vm2071, %v2064, %v2185
    %v2196 = vsel %vm2071, %v2066, %v2187
    %v2199 = vsel %vm2071, %v2068, %v2189
    %v2202 = vsel %vm2071, %v2070, %v2191
    %v2204 = vld [vmem:[%s7] sm:$0xff]
    %v2205 = vld [vmem:[%s7 + $0x8] sm:$0xf]
    %v2206 = vld [vmem:[%s7 + $0xc] sm:$0xff]
    %v2207 = vld [vmem:[%s7 + $0x14] sm:$0xf]
    %v2208 = vld [vmem:[%s7 + $0x18] sm:$0xff]
    %v2209 = vld [vmem:[%s7 + $0x20] sm:$0xf]
    %v2210 = vld [vmem:[%s7 + $0x24] sm:$0xff]
    %v2211 = vld [vmem:[%s7 + $0x2c] sm:$0xf]
    %v2212 = vld [vmem:[%s7 + $0x30] sm:$0xff]
    %v2213 = vld [vmem:[%s7 + $0x38] sm:$0xf]
    %v2214 = vld [vmem:[%s7 + $0x3c] sm:$0xff]
    %v2215 = vld [vmem:[%s7 + $0x44] sm:$0xf]
    %v2216 = vld [vmem:[%s7 + $0x48] sm:$0xff]
    %v2217 = vld [vmem:[%s7 + $0x50] sm:$0xf]
    %v2218 = vld [vmem:[%s7 + $0x54] sm:$0xff]
    %v2219 = vld [vmem:[%s7 + $0x5c] sm:$0xf]
    %v2220 = vld [vmem:[%s8] sm:$0xff]
    %v2221 = vld [vmem:[%s8 + $0x8] sm:$0xff]
    %v2222 = vld [vmem:[%s8 + $0x10] sm:$0xff]
    %v2223 = vld [vmem:[%s8 + $0x18] sm:$0xff]
    %v2224 = vld [vmem:[%s8 + $0x20] sm:$0xff]
    %v2225 = vld [vmem:[%s8 + $0x28] sm:$0xff]
    %v2226 = vld [vmem:[%s8 + $0x30] sm:$0xff]
    %v2227 = vld [vmem:[%s8 + $0x38] sm:$0xff]
    %2229 = vset.pattern.permute.xlu0 0
    %2230 = vperm.xlu0 %2229, %v2220
    %v2231 = vpop.permute.xlu0 %2230
    %2234 = vset.pattern.permute.xlu0 0
    %2235 = vperm.xlu0 %2234, %v2221
    %v2236 = vpop.permute.xlu0 %2235
    %2239 = vset.pattern.permute.xlu0 0
    %2240 = vperm.xlu0 %2239, %v2222
    %v2241 = vpop.permute.xlu0 %2240
    %2244 = vset.pattern.permute.xlu0 0
    %2245 = vperm.xlu0 %2244, %v2223
    %v2246 = vpop.permute.xlu0 %2245
    %2249 = vset.pattern.permute.xlu0 0
    %2250 = vperm.xlu0 %2249, %v2224
    %v2251 = vpop.permute.xlu0 %2250
    %2254 = vset.pattern.permute.xlu0 0
    %2255 = vperm.xlu0 %2254, %v2225
    %v2256 = vpop.permute.xlu0 %2255
    %2259 = vset.pattern.permute.xlu0 0
    %2260 = vperm.xlu0 %2259, %v2226
    %v2261 = vpop.permute.xlu0 %2260
    %2264 = vset.pattern.permute.xlu0 0
    %2265 = vperm.xlu0 %2264, %v2227
    %v2266 = vpop.permute.xlu0 %2265
    %v2284 = vunpack.c.l.b16 %v2204
    %v2285 = vunpack.c.h.b16 %v2204
    %v2286 = vunpack.c.l.b16 %v2205
    %v2287 = vunpack.c.l.b16 %v2206
    %v2288 = vunpack.c.h.b16 %v2206
    %v2289 = vunpack.c.l.b16 %v2207
    %v2290 = vunpack.c.l.b16 %v2208
    %v2291 = vunpack.c.h.b16 %v2208
    %v2292 = vunpack.c.l.b16 %v2209
    %v2293 = vunpack.c.l.b16 %v2210
    %v2294 = vunpack.c.h.b16 %v2210
    %v2295 = vunpack.c.l.b16 %v2211
    %v2296 = vunpack.c.l.b16 %v2212
    %v2297 = vunpack.c.h.b16 %v2212
    %v2298 = vunpack.c.l.b16 %v2213
    %v2299 = vunpack.c.l.b16 %v2214
    %v2300 = vunpack.c.h.b16 %v2214
    %v2301 = vunpack.c.l.b16 %v2215
    %v2302 = vunpack.c.l.b16 %v2216
    %v2303 = vunpack.c.h.b16 %v2216
    %v2304 = vunpack.c.l.b16 %v2217
    %v2305 = vunpack.c.l.b16 %v2218
    %v2306 = vunpack.c.h.b16 %v2218
    %v2307 = vunpack.c.l.b16 %v2219
    %v2308 = vpack.c.b16 %v2287, %v2284
    %v2309 = vpack.c.b16 %v2288, %v2285
    %v2310 = vpack.c.b16 %v2289, %v2286
    %v2311 = vpack.c.b16 %v2293, %v2290
    %v2312 = vpack.c.b16 %v2294, %v2291
    %v2313 = vpack.c.b16 %v2295, %v2292
    %v2314 = vpack.c.b16 %v2299, %v2296
    %v2315 = vpack.c.b16 %v2300, %v2297
    %v2316 = vpack.c.b16 %v2301, %v2298
    %v2317 = vpack.c.b16 %v2305, %v2302
    %v2318 = vpack.c.b16 %v2306, %v2303
    %v2319 = vpack.c.b16 %v2307, %v2304
    %v2329 = vsel %vm979, %v2310, 0
    %v2332 = vsel %vm979, %v2313, 0
    %v2335 = vsel %vm979, %v2316, 0
    %v2338 = vsel %vm979, %v2319, 0
    %2340 = vmatprep.subr.bf16.mxu0 0
    %2341 = vmatpush1.bf16.msra.mxu0 %v2118
    %2342 = vmatprep.subr.bf16.mxu0 0
    %2343 = vmatpush1.bf16.msra.mxu0 %v2114
    %2344 = vmatprep.subr.bf16.mxu0 0
    %2345 = vmatpush1.bf16.msra.mxu0 %v2110
    %2346 = vmatprep.subr.bf16.mxu0 0
    %2347 = vmatpush1.bf16.msra.mxu0 %v2106
    %2348 = vmatprep.subr.bf16.mxu0 0
    %2349 = vmatpush1.bf16.msra.mxu0 %v2086
    %2350 = vmatprep.subr.bf16.mxu0 0
    %2351 = vmatpush1.bf16.msra.mxu0 %v2082
    %2352 = vmatprep.subr.bf16.mxu0 0
    %2353 = vmatpush1.bf16.msra.mxu0 %v2078
    %2354 = vmatprep.subr.bf16.mxu0 0
    %2355 = vmatpush1.bf16.msra.mxu0 %v2074
    %2356 = vmatprep.subr.bf16.mxu0 0
    %2357 = vmatpush2.bf16.msra.mxu0 %v2182
    %2358 = vmatprep.subr.bf16.mxu0 0
    %2359 = vmatpush2.bf16.msra.mxu0 %v2178
    %2360 = vmatprep.subr.bf16.mxu0 0
    %2361 = vmatpush2.bf16.msra.mxu0 %v2174
    %2362 = vmatprep.subr.bf16.mxu0 0
    %2363 = vmatpush2.bf16.msra.mxu0 %v2170
    %2364 = vmatprep.subr.bf16.mxu0 0
    %2365 = vmatpush2.bf16.msra.mxu0 %v2150
    %2366 = vmatprep.subr.bf16.mxu0 0
    %2367 = vmatpush2.bf16.msra.mxu0 %v2146
    %2368 = vmatprep.subr.bf16.mxu0 0
    %2369 = vmatpush2.bf16.msra.mxu0 %v2142
    %2370 = vmatprep.subr.bf16.mxu0 0
    %2371 = vmatpush2.bf16.msra.mxu0 %v2138
    %2372 = vmatprep.mubr.bf16.mxu0 %v2309
    %2373 = vmatmul.mubr.bf16.gmra.mxu0 %v2308
    %v2374 = vpop.f32.mrf.mxu0
    %v2375 = vadd.f32 %v2231, %v2374
    %v2376 = vpop.f32.mrf.mxu0
    %v2377 = vpop.f32.mrf.mxu0
    %v2378 = vadd.f32 %v2236, %v2377
    %v2379 = vpop.f32.mrf.mxu0
    %2380 = vmatprep.mubr.bf16.mxu0 %v2312
    %2381 = vmatmul.mubr.bf16.gmra.mxu0 %v2311
    %v2382 = vpop.f32.mrf.mxu0
    %v2383 = vadd.f32 %v2241, %v2382
    %v2384 = vpop.f32.mrf.mxu0
    %v2385 = vpop.f32.mrf.mxu0
    %v2386 = vadd.f32 %v2246, %v2385
    %v2387 = vpop.f32.mrf.mxu0
    %2388 = vmatprep.mubr.bf16.mxu0 %v2315
    %2389 = vmatmul.mubr.bf16.gmra.mxu0 %v2314
    %v2390 = vpop.f32.mrf.mxu0
    %v2391 = vadd.f32 %v2251, %v2390
    %v2392 = vpop.f32.mrf.mxu0
    %v2393 = vpop.f32.mrf.mxu0
    %v2394 = vadd.f32 %v2256, %v2393
    %v2395 = vpop.f32.mrf.mxu0
    %2396 = vmatprep.mubr.bf16.mxu0 %v2318
    %2397 = vmatmul.mubr.bf16.gmra.mxu0 %v2317
    %v2398 = vpop.f32.mrf.mxu0
    %v2399 = vadd.f32 %v2261, %v2398
    %v2400 = vpop.f32.mrf.mxu0
    %v2401 = vpop.f32.mrf.mxu0
    %v2402 = vadd.f32 %v2266, %v2401
    %v2403 = vpop.f32.mrf.mxu0
    %2404 = vdwg.mxu0
    %2405 = vmatprep.subr.bf16.mxu0 0
    %2406 = vmatpush1.bf16.msra.mxu0 0
    %2407 = vmatprep.subr.bf16.mxu0 0
    %2408 = vmatpush1.bf16.msra.mxu0 0
    %2409 = vmatprep.subr.bf16.mxu0 0
    %2410 = vmatpush1.bf16.msra.mxu0 0
    %2411 = vmatprep.subr.bf16.mxu0 0
    %2412 = vmatpush1.bf16.msra.mxu0 0
    %2413 = vmatprep.subr.bf16.mxu0 0
    %2414 = vmatpush1.bf16.msra.mxu0 %v2202
    %2415 = vmatprep.subr.bf16.mxu0 0
    %2416 = vmatpush1.bf16.msra.mxu0 %v2199
    %2417 = vmatprep.subr.bf16.mxu0 0
    %2418 = vmatpush1.bf16.msra.mxu0 %v2196
    %2419 = vmatprep.subr.bf16.mxu0 0
    %2420 = vmatpush1.bf16.msra.mxu0 %v2193
    %2421 = vmatprep.subr.bf16.mxu0 0
    %2422 = vmatpush2.bf16.msra.mxu0 0
    %2423 = vmatprep.subr.bf16.mxu0 0
    %2424 = vmatpush2.bf16.msra.mxu0 0
    %2425 = vmatprep.subr.bf16.mxu0 0
    %2426 = vmatpush2.bf16.msra.mxu0 0
    %2427 = vmatprep.subr.bf16.mxu0 0
    %2428 = vmatpush2.bf16.msra.mxu0 0
    %2429 = vmatprep.subr.bf16.mxu0 0
    %2430 = vmatpush2.bf16.msra.mxu0 0
    %2431 = vmatprep.subr.bf16.mxu0 0
    %2432 = vmatpush2.bf16.msra.mxu0 0
    %2433 = vmatprep.subr.bf16.mxu0 0
    %2434 = vmatpush2.bf16.msra.mxu0 0
    %2435 = vmatprep.subr.bf16.mxu0 0
    %2436 = vmatpush2.bf16.msra.mxu0 0
    %2437 = vmatprep.mubr.bf16.mxu0 0
    %2438 = vmatmul.mubr.bf16.gmra.mxu0 %v2329
    %v2439 = vpop.f32.mrf.mxu0
    %v2440 = vadd.f32 %v2375, %v2439
    %v2441 = vpop.f32.mrf.mxu0
    %v2442 = vpop.f32.mrf.mxu0
    %v2443 = vadd.f32 %v2378, %v2442
    %v2444 = vpop.f32.mrf.mxu0
    %2445 = vmatprep.mubr.bf16.mxu0 0
    %2446 = vmatmul.mubr.bf16.gmra.mxu0 %v2332
    %v2447 = vpop.f32.mrf.mxu0
    %v2448 = vadd.f32 %v2383, %v2447
    %v2449 = vpop.f32.mrf.mxu0
    %v2450 = vpop.f32.mrf.mxu0
    %v2451 = vadd.f32 %v2386, %v2450
    %v2452 = vpop.f32.mrf.mxu0
    %2453 = vmatprep.mubr.bf16.mxu0 0
    %2454 = vmatmul.mubr.bf16.gmra.mxu0 %v2335
    %v2455 = vpop.f32.mrf.mxu0
    %v2456 = vadd.f32 %v2391, %v2455
    %v2457 = vpop.f32.mrf.mxu0
    %v2458 = vpop.f32.mrf.mxu0
    %v2459 = vadd.f32 %v2394, %v2458
    %v2460 = vpop.f32.mrf.mxu0
    %2461 = vmatprep.mubr.bf16.mxu0 0
    %2462 = vmatmul.mubr.bf16.gmra.mxu0 %v2338
    %v2463 = vpop.f32.mrf.mxu0
    %v2464 = vadd.f32 %v2399, %v2463
    %v2465 = vpop.f32.mrf.mxu0
    %v2466 = vpop.f32.mrf.mxu0
    %v2467 = vadd.f32 %v2402, %v2466
    %v2468 = vpop.f32.mrf.mxu0
    %2469 = vdwg.mxu0
    %v2470 = vmax.f32 %v2440, 0.0
    %v2471 = vmax.f32 %v2443, 0.0
    %v2472 = vmax.f32 %v2448, 0.0
    %v2473 = vmax.f32 %v2451, 0.0
    %v2474 = vmax.f32 %v2456, 0.0
    %v2475 = vmax.f32 %v2459, 0.0
    %v2476 = vmax.f32 %v2464, 0.0
    %v2477 = vmax.f32 %v2467, 0.0
    %2486 = vrot.lane.b32.xlu0 %v2470, 126
    %v2487 = vpop.permute.xlu0 %2486
    %2488 = vrot.lane.b32.xlu0 %v2471, 126
    %v2489 = vpop.permute.xlu0 %2488
    %2490 = vrot.lane.b32.xlu0 %v2472, 126
    %v2491 = vpop.permute.xlu0 %2490
    %2492 = vrot.lane.b32.xlu0 %v2473, 126
    %v2493 = vpop.permute.xlu0 %2492
    %2494 = vrot.lane.b32.xlu0 %v2474, 126
    %v2495 = vpop.permute.xlu0 %2494
    %2496 = vrot.lane.b32.xlu0 %v2475, 126
    %v2497 = vpop.permute.xlu0 %2496
    %2498 = vrot.lane.b32.xlu0 %v2476, 126
    %v2499 = vpop.permute.xlu0 %2498
    %2500 = vrot.lane.b32.xlu0 %v2477, 126
    %v2501 = vpop.permute.xlu0 %2500
    %vm2510 = vcmask 392192
    %v2511 = vsel %vm2510, %v2470, %v2487
    %v2512 = vsel %vm2510, %v2471, %v2489
    %v2513 = vsel %vm2510, %v2472, %v2491
    %v2514 = vsel %vm2510, %v2473, %v2493
    %v2515 = vsel %vm2510, %v2474, %v2495
    %v2516 = vsel %vm2510, %v2475, %v2497
    %v2517 = vsel %vm2510, %v2476, %v2499
    %v2518 = vsel %vm2510, %v2477, %v2501
    %2519 = vrot.lane.b32.xlu0 %v2470, 127
    %v2520 = vpop.permute.xlu0 %2519
    %2521 = vrot.lane.b32.xlu0 %v2471, 127
    %v2522 = vpop.permute.xlu0 %2521
    %2523 = vrot.lane.b32.xlu0 %v2472, 127
    %v2524 = vpop.permute.xlu0 %2523
    %2525 = vrot.lane.b32.xlu0 %v2473, 127
    %v2526 = vpop.permute.xlu0 %2525
    %2527 = vrot.lane.b32.xlu0 %v2474, 127
    %v2528 = vpop.permute.xlu0 %2527
    %2529 = vrot.lane.b32.xlu0 %v2475, 127
    %v2530 = vpop.permute.xlu0 %2529
    %2531 = vrot.lane.b32.xlu0 %v2476, 127
    %v2532 = vpop.permute.xlu0 %2531
    %2533 = vrot.lane.b32.xlu0 %v2477, 127
    %v2534 = vpop.permute.xlu0 %2533
    %2543 = vrot.lane.b32.xlu0 %v2470, 125
    %v2544 = vpop.permute.xlu0 %2543
    %2545 = vrot.lane.b32.xlu0 %v2471, 125
    %v2546 = vpop.permute.xlu0 %2545
    %2547 = vrot.lane.b32.xlu0 %v2472, 125
    %v2548 = vpop.permute.xlu0 %2547
    %2549 = vrot.lane.b32.xlu0 %v2473, 125
    %v2550 = vpop.permute.xlu0 %2549
    %2551 = vrot.lane.b32.xlu0 %v2474, 125
    %v2552 = vpop.permute.xlu0 %2551
    %2553 = vrot.lane.b32.xlu0 %v2475, 125
    %v2554 = vpop.permute.xlu0 %2553
    %2555 = vrot.lane.b32.xlu0 %v2476, 125
    %v2556 = vpop.permute.xlu0 %2555
    %2557 = vrot.lane.b32.xlu0 %v2477, 125
    %v2558 = vpop.permute.xlu0 %2557
    %v2567 = vsel %vm2510, %v2520, %v2544
    %v2568 = vsel %vm2510, %v2522, %v2546
    %v2569 = vsel %vm2510, %v2524, %v2548
    %v2570 = vsel %vm2510, %v2526, %v2550
    %v2571 = vsel %vm2510, %v2528, %v2552
    %v2572 = vsel %vm2510, %v2530, %v2554
    %v2573 = vsel %vm2510, %v2532, %v2556
    %v2574 = vsel %vm2510, %v2534, %v2558
    %v2575 = vmax.f32 %v2511, %v2567
    %v2576 = vmax.f32 %v2512, %v2568
    %v2577 = vmax.f32 %v2513, %v2569
    %v2578 = vmax.f32 %v2514, %v2570
    %v2579 = vmax.f32 %v2515, %v2571
    %v2580 = vmax.f32 %v2516, %v2572
    %v2581 = vmax.f32 %v2517, %v2573
    %v2582 = vmax.f32 %v2518, %v2574
    %2583 = vrot.lane.b32.xlu0 %v2470, 124
    %v2584 = vpop.permute.xlu0 %2583
    %2585 = vrot.lane.b32.xlu0 %v2471, 124
    %v2586 = vpop.permute.xlu0 %2585
    %2587 = vrot.lane.b32.xlu0 %v2472, 124
    %v2588 = vpop.permute.xlu0 %2587
    %2589 = vrot.lane.b32.xlu0 %v2473, 124
    %v2590 = vpop.permute.xlu0 %2589
    %2591 = vrot.lane.b32.xlu0 %v2474, 124
    %v2592 = vpop.permute.xlu0 %2591
    %2593 = vrot.lane.b32.xlu0 %v2475, 124
    %v2594 = vpop.permute.xlu0 %2593
    %2595 = vrot.lane.b32.xlu0 %v2476, 124
    %v2596 = vpop.permute.xlu0 %2595
    %2597 = vrot.lane.b32.xlu0 %v2477, 124
    %v2598 = vpop.permute.xlu0 %2597
    %v2607 = vsel %vm2510, %v2487, %v2584
    %v2608 = vsel %vm2510, %v2489, %v2586
    %v2609 = vsel %vm2510, %v2491, %v2588
    %v2610 = vsel %vm2510, %v2493, %v2590
    %v2611 = vsel %vm2510, %v2495, %v2592
    %v2612 = vsel %vm2510, %v2497, %v2594
    %v2613 = vsel %vm2510, %v2499, %v2596
    %v2614 = vsel %vm2510, %v2501, %v2598
    %v2615 = vmax.f32 %v2575, %v2607
    %v2616 = vmax.f32 %v2576, %v2608
    %v2617 = vmax.f32 %v2577, %v2609
    %v2618 = vmax.f32 %v2578, %v2610
    %v2619 = vmax.f32 %v2579, %v2611
    %v2620 = vmax.f32 %v2580, %v2612
    %v2621 = vmax.f32 %v2581, %v2613
    %v2622 = vmax.f32 %v2582, %v2614
    %v2623 = vpack.c.bf16 %v2616, %v2615
    %v2624 = vpack.c.bf16 %v2618, %v2617
    %v2625 = vpack.c.bf16 %v2620, %v2619
    %v2626 = vpack.c.bf16 %v2622, %v2621
    %v2631 = vunpack.c.l.b16 %v2623
    %v2632 = vunpack.c.h.b16 %v2623
    %v2633 = vunpack.c.l.b16 %v2624
    %v2634 = vunpack.c.h.b16 %v2624
    %v2635 = vunpack.c.l.b16 %v2625
    %v2636 = vunpack.c.h.b16 %v2625
    %v2637 = vunpack.c.l.b16 %v2626
    %v2638 = vunpack.c.h.b16 %v2626
    %v2639 = vpack.c.b16 %v2631, %v2631
    %v2640 = vpack.c.b16 %v2632, %v2632
    %v2641 = vpack.c.b16 %v2633, %v2633
    %v2642 = vpack.c.b16 %v2634, %v2634
    %v2643 = vpack.c.b16 %v2635, %v2635
    %v2644 = vpack.c.b16 %v2636, %v2636
    %v2645 = vpack.c.b16 %v2637, %v2637
    %v2646 = vpack.c.b16 %v2638, %v2638
    %vm2655 = vcmask 781312
    %2656 = vst.msk [vmem:[#allocation2] sm:$0xf] %vm2655, %v2639
    %2657 = vst.msk [vmem:[#allocation2 + $0x4] sm:$0xf] %vm2655, %v2640
    %2658 = vst.msk [vmem:[#allocation2 + $0x8] sm:$0xf] %vm2655, %v2641
    %2659 = vst.msk [vmem:[#allocation2 + $0xc] sm:$0xf] %vm2655, %v2642
    %2660 = vst.msk [vmem:[#allocation2 + $0x10] sm:$0xf] %vm2655, %v2643
    %2661 = vst.msk [vmem:[#allocation2 + $0x14] sm:$0xf] %vm2655, %v2644
    %2662 = vst.msk [vmem:[#allocation2 + $0x18] sm:$0xf] %vm2655, %v2645
    %2663 = vst.msk [vmem:[#allocation2 + $0x1c] sm:$0xf] %vm2655, %v2646
    // Predicated region
    $region38: #{tpu_custom_call.1} parent=1 // pred_check
      _
    $region39: #{tpu_custom_call.1} parent=1 // pred_check_branch
      %2665 = sbr.rel (0) target = $region41
    $region40: #{tpu_custom_call.1} parent=1 // pred_region
      %s2667 = ssub.s32 512, 512
      %2668 = vsyncadd [#allocation3], %s2667
      %s2669 = sshll.u32 [#allocation2], 4
      %s2670 = int_to_ptr.vmem [resolvable:$true] %s2669
      %2675 = dma.vmem_to_hbm [thread:$0]  %s2670, 512, %s9, [#allocation3], 64, 64, 4
    $region41: #{tpu_custom_call.1} parent=1 // pred_fallthru
      _
    // Predicated region
    $region42: #{tpu_custom_call.1} parent=1 // pred_check
      _
    $region43: #{tpu_custom_call.1} parent=1 // pred_check_branch
      %2677 = sbr.rel (0) target = $region45
    $region44: #{tpu_custom_call.1} parent=1 // pred_region
      %2678 = dma.done [#allocation3], 512
    $region45: #{tpu_custom_call.1} parent=1 // pred_fallthru
      _
    %2679 = vsyncpa [#allocation3], 1

</llo_original>
